<compile_context>
chip_gen: v6e
topology: v6e:2x2x1
jax: 0.10.0
libtpu: 0.0.40
codegen_flags: <defaults>
</compile_context>

<pallas_src>
import math
import functools

import numpy as np
import jax
import jax.numpy as jnp
from jax.experimental import pallas as pl
from jax.experimental.pallas import tpu as pltpu


# --------------------------------------------------------------------------
# in-kernel helpers (traced inside the Pallas kernel body, f32 math)
# --------------------------------------------------------------------------
def _layernorm(z, alpha, bias, eps=1e-6):
    mu = jnp.mean(z, axis=-1, keepdims=True)
    var = jnp.mean((z - mu) ** 2, axis=-1, keepdims=True)
    return (z - mu) * jax.lax.rsqrt(var + eps) * alpha + bias


def _softmax(s):
    m = jnp.max(s, axis=-1, keepdims=True)
    e = jnp.exp(s - m)
    return e * pl.reciprocal(jnp.sum(e, axis=-1, keepdims=True), approx=True)


# --------------------------------------------------------------------------
# the fused kernel: one batch tile per grid step
# --------------------------------------------------------------------------
def flexscale_encoder_kernel(
    num_head,
    x_ref,
    ln1, wqkv, bqkv, wsd_t, bsd, wo, wdf, b_h1, ln2, w1, b1, w2, b2,
    o_ref,
):
    f32 = jnp.float32
    bf16 = jnp.bfloat16

    Bt, S_in, D_in = x_ref.shape
    _, out_seq, d_out = o_ref.shape
    dk = d_out // num_head
    scale = 1.0 / math.sqrt(dk)

    x = x_ref[...]                                    # (Bt, S_in, D_in) f32
    x2 = x.reshape(Bt * S_in, D_in)                   # flatten batch into rows

    # ---------------- residual_1:  skip(x) + attention(LN1(x)) ------------
    xn = _layernorm(x2, ln1[0], ln1[1])

    # fused Q/K/V projection: one (rows, D_in) @ (D_in, 128-padded) matmul
    qkv = jnp.dot(xn.astype(bf16), wqkv[...],
                  preferred_element_type=f32) + bqkv[0]        # (Bt*S_in, pad)
    q = qkv[:, 0 * d_out:1 * d_out].reshape(Bt, S_in, d_out)
    k = qkv[:, 1 * d_out:2 * d_out].reshape(Bt, S_in, d_out)
    v = qkv[:, 2 * d_out:3 * d_out].reshape(Bt, S_in, d_out)

    # query seq-downscale; wsd_t[0] is wsq^T (out_seq, in_seq), pre-transposed
    wsq_t = jnp.broadcast_to(wsd_t[0], (Bt, out_seq, S_in))
    q_ds = jnp.einsum('bos,bsd->bod', wsq_t, q.astype(bf16),
                      preferred_element_type=f32) + bsd[0]     # (Bt, out_seq, d_out)

    q_sc = (q_ds * scale).astype(bf16)                # fold 1/sqrt(dk) into q
    k_bf = k.astype(bf16)
    v_bf = v.astype(bf16)

    heads = []
    for h in range(num_head):          # static unroll; each op batched over Bt
        qh = q_sc[:, :, h * dk:(h + 1) * dk]          # (Bt, out_seq, dk)
        kh = k_bf[:, :, h * dk:(h + 1) * dk]          # (Bt, S_in, dk)
        vh = v_bf[:, :, h * dk:(h + 1) * dk]
        s = jnp.einsum('bod,bsd->bos', qh, kh, preferred_element_type=f32)
        p = _softmax(s)                               # f32
        heads.append(jnp.einsum('bos,bsd->bod', p.astype(bf16), vh,
                                preferred_element_type=f32))
    attn = jnp.concatenate(heads, axis=-1).reshape(Bt * out_seq, d_out)
    attn = jnp.dot(attn.astype(bf16), wo[...], preferred_element_type=f32)

    # skip path on the raw input: seq downscale (pre-transposed), then feature
    wds_t = jnp.broadcast_to(wsd_t[1], (Bt, out_seq, S_in))
    x_sd = jnp.einsum('bos,bsd->bod', wds_t, x.astype(bf16),
                      preferred_element_type=f32) + bsd[1]     # (Bt, out_seq, D_in)
    x_down = jnp.dot(x_sd.reshape(Bt * out_seq, D_in).astype(bf16), wdf[...],
                     preferred_element_type=f32)

    h1 = attn + x_down + b_h1[0]       # fused (bo + bdf) bias; dropout = identity

    # ---------------- residual_2:  h1 + FF(LN2(h1)) ------------------------
    h1n = _layernorm(h1, ln2[0], ln2[1])
    ff = jnp.dot(h1n.astype(bf16), w1[...], preferred_element_type=f32) + b1[0]
    ff = jnp.maximum(ff, 0.0)
    ff = jnp.dot(ff.astype(bf16), w2[...], preferred_element_type=f32) + b2[0]

    out = h1 + ff                                      # (Bt*out_seq, d_out)
    o_ref[...] = out.reshape(Bt, out_seq, d_out).astype(o_ref.dtype)


# --------------------------------------------------------------------------
# host-side parameter packing (fuse / pre-transpose / cast to bf16)
# --------------------------------------------------------------------------
def _pack_params(p):
    bf16 = jnp.bfloat16
    wqkv = jnp.concatenate([p["wq"], p["wk"], p["wv"]], axis=1)   # (D_in, 3*D_out)
    bqkv = jnp.concatenate([p["bq"], p["bk"], p["bv"]], axis=1)   # (1, 3*D_out)
    n_pad = (-wqkv.shape[1]) % 128                                # lane-dense fused N
    if n_pad:
        wqkv = jnp.pad(wqkv, ((0, 0), (0, n_pad)))
        bqkv = jnp.pad(bqkv, ((0, 0), (0, n_pad)))
    ln1 = jnp.concatenate([p["ln1_a"], p["ln1_b"]], axis=0)       # (2, D_in)
    ln2 = jnp.concatenate([p["ln2_a"], p["ln2_b"]], axis=0)       # (2, D_out)
    wsd_t = jnp.stack([p["wsq"].T, p["wds"].T]).astype(bf16)      # (2, out_seq, in_seq)
    bsd = jnp.stack([p["bsq"].T, p["bds"].T])                     # (2, out_seq, 1)
    b_h1 = p["bo"] + p["bdf"]                                     # fused residual-1 bias
    return [
        ln1,
        wqkv.astype(bf16), bqkv,
        wsd_t, bsd,
        p["wo"].astype(bf16), p["wdf"].astype(bf16), b_h1,
        ln2,
        p["w1"].astype(bf16), p["b1"],
        p["w2"].astype(bf16), p["b2"],
    ]


# --------------------------------------------------------------------------
# wrapper
# --------------------------------------------------------------------------
def flexscale_encoder_block(x, params, *, out_seq, out_feature, num_head,
                            batch_tile=None):
    B, S_in, D_in = x.shape
    assert out_feature % num_head == 0
    if batch_tile is None:
        batch_tile = B if B <= 8 else 8
    assert B % batch_tile == 0, "batch must be divisible by batch_tile"

    weights = _pack_params(params)

    x_spec = pl.BlockSpec((batch_tile, S_in, D_in), lambda b: (b, 0, 0))
    w_specs = [pl.BlockSpec(w.shape, lambda b, nd=w.ndim: (0,) * nd)
               for w in weights]
    out_spec = pl.BlockSpec((batch_tile, out_seq, out_feature),
                            lambda b: (b, 0, 0))

    kernel = functools.partial(flexscale_encoder_kernel, num_head)

    return pl.pallas_call(
        kernel,
        out_shape=jax.ShapeDtypeStruct((B, out_seq, out_feature), jnp.float32),
        grid=(B // batch_tile,),
        in_specs=[x_spec] + w_specs,
        out_specs=out_spec,
        compiler_params=pltpu.CompilerParams(
            # batch tiles are independent -> shard across TensorCores on v7x
            dimension_semantics=("parallel",),
        ),
    )(x, *weights)


# --------------------------------------------------------------------------
# pure-JAX f32 reference (same math, for a sanity check)
# --------------------------------------------------------------------------
def reference(x, p, *, num_head):
    def ln(z, a, b, eps=1e-6):
        mu = z.mean(-1, keepdims=True)
        var = ((z - mu) ** 2).mean(-1, keepdims=True)
        return (z - mu) / jnp.sqrt(var + eps) * a[0] + b[0]

    xn = ln(x, p["ln1_a"], p["ln1_b"])
    q = xn @ p["wq"] + p["bq"][0]
    k = xn @ p["wk"] + p["bk"][0]
    v = xn @ p["wv"] + p["bv"][0]
    q_ds = jnp.swapaxes(jnp.swapaxes(q, -1, -2) @ p["wsq"] + p["bsq"][0], -1, -2)

    B, S_out, D_out = q_ds.shape
    dk = D_out // num_head
    qh = q_ds.reshape(B, S_out, num_head, dk).transpose(0, 2, 1, 3)
    kh = k.reshape(B, -1, num_head, dk).transpose(0, 2, 1, 3)
    vh = v.reshape(B, -1, num_head, dk).transpose(0, 2, 1, 3)
    s = jnp.einsum("bhqd,bhkd->bhqk", qh, kh) / math.sqrt(dk)
    pr = jax.nn.softmax(s, axis=-1)
    attn = jnp.einsum("bhqk,bhkd->bhqd", pr, vh).transpose(0, 2, 1, 3).reshape(B, S_out, D_out)
    attn = attn @ p["wo"] + p["bo"][0]

    x_sd = jnp.swapaxes(jnp.swapaxes(x, -1, -2) @ p["wds"] + p["bds"][0], -1, -2)
    x_down = x_sd @ p["wdf"] + p["bdf"][0]
    h1 = x_down + attn

    h1n = ln(h1, p["ln2_a"], p["ln2_b"])
    ff = jax.nn.relu(h1n @ p["w1"] + p["b1"][0]) @ p["w2"] + p["b2"][0]
    return h1 + ff


# --------------------------------------------------------------------------
# deterministic parameter construction
# --------------------------------------------------------------------------
def init_params(key, in_feature, out_feature, in_seq, out_seq, d_ff):
    ks = jax.random.split(key, 16)
    n = lambda k, shp, s=0.05: (jax.random.normal(k, shp, jnp.float32) * s)
    return {
        "ln1_a": jnp.ones((1, in_feature), jnp.float32),
        "ln1_b": jnp.zeros((1, in_feature), jnp.float32),
        "wq": n(ks[0], (in_feature, out_feature)),
        "bq": n(ks[1], (1, out_feature), 0.01),
        "wk": n(ks[2], (in_feature, out_feature)),
        "bk": n(ks[3], (1, out_feature), 0.01),
        "wv": n(ks[4], (in_feature, out_feature)),
        "bv": n(ks[5], (1, out_feature), 0.01),
        "wsq": n(ks[6], (in_seq, out_seq)),
        "bsq": n(ks[7], (1, out_seq), 0.01),
        "wo": n(ks[8], (out_feature, out_feature)),
        "bo": n(ks[9], (1, out_feature), 0.01),
        "wds": n(ks[10], (in_seq, out_seq)),
        "bds": n(ks[11], (1, out_seq), 0.01),
        "wdf": n(ks[12], (in_feature, out_feature)),
        "bdf": n(ks[13], (1, out_feature), 0.01),
        "ln2_a": jnp.ones((1, out_feature), jnp.float32),
        "ln2_b": jnp.zeros((1, out_feature), jnp.float32),
        "w1": n(ks[14], (out_feature, d_ff)),
        "b1": jnp.zeros((1, d_ff), jnp.float32),
        "w2": n(ks[15], (d_ff, out_feature)),
        "b2": jnp.zeros((1, out_feature), jnp.float32),
    }


if __name__ == "__main__":
    B = 2
    in_feature, out_feature = 16, 32
    in_seq, out_seq = 16, 8
    d_ff = 64
    num_head = 4

    key = jax.random.PRNGKey(0)
    kx, kp = jax.random.split(key)
    x = jax.random.normal(kx, (B, in_seq, in_feature), jnp.float32)
    params = init_params(kp, in_feature, out_feature, in_seq, out_seq, d_ff)

    out = flexscale_encoder_block(
        x, params, out_seq=out_seq, out_feature=out_feature, num_head=num_head
    )
    out = jax.block_until_ready(out)

    ref = jax.block_until_ready(reference(x, params, num_head=num_head))
    assert out.shape == (B, out_seq, out_feature)
    # bf16 matmul operands (f32 accumulate) -> loosened tolerance vs f32 ref
    np.testing.assert_allclose(np.asarray(out), np.asarray(ref), rtol=5e-2, atol=3e-2)

    print("KERNEL_OK")
</pallas_src>

<mosaic_0001>
module attributes {stable_mosaic.version = 11 : i64} {
  func.func @flexscale_encoder_kernel(%arg0: i32, %arg1: memref<2x16x16xf32, #tpu.memory_space<vmem>>, %arg2: memref<2x16xf32, #tpu.memory_space<vmem>>, %arg3: memref<16x128xbf16, #tpu.memory_space<vmem>>, %arg4: memref<1x128xf32, #tpu.memory_space<vmem>>, %arg5: memref<2x8x16xbf16, #tpu.memory_space<vmem>>, %arg6: memref<2x8x1xf32, #tpu.memory_space<vmem>>, %arg7: memref<32x32xbf16, #tpu.memory_space<vmem>>, %arg8: memref<16x32xbf16, #tpu.memory_space<vmem>>, %arg9: memref<1x32xf32, #tpu.memory_space<vmem>>, %arg10: memref<2x32xf32, #tpu.memory_space<vmem>>, %arg11: memref<32x64xbf16, #tpu.memory_space<vmem>>, %arg12: memref<1x64xf32, #tpu.memory_space<vmem>>, %arg13: memref<64x32xbf16, #tpu.memory_space<vmem>>, %arg14: memref<1x32xf32, #tpu.memory_space<vmem>>, %arg15: memref<2x8x32xf32, #tpu.memory_space<vmem>>) attributes {dimension_semantics = [#tpu.dimension_semantics<parallel>], iteration_bounds = array<i64: 1>, scalar_prefetch = 0 : i64, scratch_operands = 0 : i64, tpu.core_type = #tpu.core_type<tc>, window_params = [{transform_indices = @transform_0, window_bounds = array<i64: 2, 16, 16>}, {pipeline_mode = #tpu.pipeline_mode<synchronous>, transform_indices = @transform_1, window_bounds = array<i64: 2, 16>}, {pipeline_mode = #tpu.pipeline_mode<synchronous>, transform_indices = @transform_2, window_bounds = array<i64: 16, 128>}, {pipeline_mode = #tpu.pipeline_mode<synchronous>, transform_indices = @transform_3, window_bounds = array<i64: 1, 128>}, {pipeline_mode = #tpu.pipeline_mode<synchronous>, transform_indices = @transform_4, window_bounds = array<i64: 2, 8, 16>}, {pipeline_mode = #tpu.pipeline_mode<synchronous>, transform_indices = @transform_5, window_bounds = array<i64: 2, 8, 1>}, {pipeline_mode = #tpu.pipeline_mode<synchronous>, transform_indices = @transform_6, window_bounds = array<i64: 32, 32>}, {pipeline_mode = #tpu.pipeline_mode<synchronous>, transform_indices = @transform_7, window_bounds = array<i64: 16, 32>}, {pipeline_mode = #tpu.pipeline_mode<synchronous>, transform_indices = @transform_8, window_bounds = array<i64: 1, 32>}, {pipeline_mode = #tpu.pipeline_mode<synchronous>, transform_indices = @transform_9, window_bounds = array<i64: 2, 32>}, {pipeline_mode = #tpu.pipeline_mode<synchronous>, transform_indices = @transform_10, window_bounds = array<i64: 32, 64>}, {pipeline_mode = #tpu.pipeline_mode<synchronous>, transform_indices = @transform_11, window_bounds = array<i64: 1, 64>}, {pipeline_mode = #tpu.pipeline_mode<synchronous>, transform_indices = @transform_12, window_bounds = array<i64: 64, 32>}, {pipeline_mode = #tpu.pipeline_mode<synchronous>, transform_indices = @transform_13, window_bounds = array<i64: 1, 32>}, {transform_indices = @transform_14, window_bounds = array<i64: 2, 8, 32>}]} {
    %c0 = arith.constant 0 : index
    %c0_0 = arith.constant 0 : index
    %c0_1 = arith.constant 0 : index
    %0 = vector.load %arg1[%c0, %c0_0, %c0_1] : memref<2x16x16xf32, #tpu.memory_space<vmem>>, vector<2x16x16xf32>
    %1 = vector.shape_cast %0 : vector<2x16x16xf32> to vector<32x16xf32>
    %c0_2 = arith.constant 0 : index
    %c0_3 = arith.constant 0 : index
    %2 = vector.load %arg2[%c0_2, %c0_3] : memref<2x16xf32, #tpu.memory_space<vmem>>, vector<1x16xf32>
    %3 = vector.shape_cast %2 : vector<1x16xf32> to vector<16xf32>
    %c1 = arith.constant 1 : index
    %c0_4 = arith.constant 0 : index
    %4 = vector.load %arg2[%c1, %c0_4] : memref<2x16xf32, #tpu.memory_space<vmem>>, vector<1x16xf32>
    %5 = vector.shape_cast %4 : vector<1x16xf32> to vector<16xf32>
    %cst = arith.constant dense<0.000000e+00> : vector<32xf32>
    %6 = vector.multi_reduction <add>, %1, %cst [1] : vector<32x16xf32> to vector<32xf32>
    %7 = vector.shape_cast %6 : vector<32xf32> to vector<32x1xf32>
    %cst_5 = arith.constant 1.600000e+01 : f32
    %8 = vector.broadcast %cst_5 : f32 to vector<32x1xf32>
    %9 = arith.divf %7, %8 : vector<32x1xf32>
    %10 = vector.broadcast %9 : vector<32x1xf32> to vector<32x16xf32>
    %11 = arith.subf %1, %10 : vector<32x16xf32>
    %12 = arith.mulf %11, %11 : vector<32x16xf32>
    %cst_6 = arith.constant dense<0.000000e+00> : vector<32xf32>
    %13 = vector.multi_reduction <add>, %12, %cst_6 [1] : vector<32x16xf32> to vector<32xf32>
    %14 = vector.shape_cast %13 : vector<32xf32> to vector<32x1xf32>
    %cst_7 = arith.constant 1.600000e+01 : f32
    %15 = vector.broadcast %cst_7 : f32 to vector<32x1xf32>
    %16 = arith.divf %14, %15 : vector<32x1xf32>
    %17 = vector.broadcast %9 : vector<32x1xf32> to vector<32x16xf32>
    %18 = arith.subf %1, %17 : vector<32x16xf32>
    %cst_8 = arith.constant 9.99999997E-7 : f32
    %19 = vector.broadcast %cst_8 : f32 to vector<32x1xf32>
    %20 = arith.addf %16, %19 : vector<32x1xf32>
    %21 = math.rsqrt %20 : vector<32x1xf32>
    %22 = vector.broadcast %21 : vector<32x1xf32> to vector<32x16xf32>
    %23 = arith.mulf %18, %22 : vector<32x16xf32>
    %24 = vector.shape_cast %3 : vector<16xf32> to vector<1x16xf32>
    %25 = vector.broadcast %24 : vector<1x16xf32> to vector<32x16xf32>
    %26 = arith.mulf %23, %25 : vector<32x16xf32>
    %27 = vector.shape_cast %5 : vector<16xf32> to vector<1x16xf32>
    %28 = vector.broadcast %27 : vector<1x16xf32> to vector<32x16xf32>
    %29 = arith.addf %26, %28 : vector<32x16xf32>
    %30 = arith.truncf %29 : vector<32x16xf32> to vector<32x16xbf16>
    %c0_9 = arith.constant 0 : index
    %c0_10 = arith.constant 0 : index
    %31 = vector.load %arg3[%c0_9, %c0_10] : memref<16x128xbf16, #tpu.memory_space<vmem>>, vector<16x128xbf16>
    %cst_11 = arith.constant dense<0.000000e+00> : vector<32x128xf32>
    %32 = tpu.matmul %30, %31, %cst_11 {dimension_numbers = #tpu.dot_dimension_numbers<[1], [0], [0], [1], [0, 0, 1, 1], [], []>} : vector<32x16xbf16>, vector<16x128xbf16>, vector<32x128xf32> -> vector<32x128xf32>
    %c0_12 = arith.constant 0 : index
    %c0_13 = arith.constant 0 : index
    %33 = vector.load %arg4[%c0_12, %c0_13] : memref<1x128xf32, #tpu.memory_space<vmem>>, vector<1x128xf32>
    %34 = vector.shape_cast %33 : vector<1x128xf32> to vector<128xf32>
    %35 = vector.shape_cast %34 : vector<128xf32> to vector<1x128xf32>
    %36 = vector.broadcast %35 : vector<1x128xf32> to vector<32x128xf32>
    %37 = arith.addf %32, %36 : vector<32x128xf32>
    %38 = vector.extract_strided_slice %37 {offsets = [0, 0], sizes = [32, 32], strides = [1, 1]} : vector<32x128xf32> to vector<32x32xf32>
    %39 = vector.shape_cast %38 : vector<32x32xf32> to vector<2x16x32xf32>
    %40 = vector.extract_strided_slice %37 {offsets = [0, 32], sizes = [32, 32], strides = [1, 1]} : vector<32x128xf32> to vector<32x32xf32>
    %41 = vector.shape_cast %40 : vector<32x32xf32> to vector<2x16x32xf32>
    %42 = vector.extract_strided_slice %37 {offsets = [0, 64], sizes = [32, 32], strides = [1, 1]} : vector<32x128xf32> to vector<32x32xf32>
    %43 = vector.shape_cast %42 : vector<32x32xf32> to vector<2x16x32xf32>
    %c0_14 = arith.constant 0 : index
    %c0_15 = arith.constant 0 : index
    %c0_16 = arith.constant 0 : index
    %44 = vector.load %arg5[%c0_14, %c0_15, %c0_16] : memref<2x8x16xbf16, #tpu.memory_space<vmem>>, vector<1x8x16xbf16>
    %45 = vector.shape_cast %44 : vector<1x8x16xbf16> to vector<8x16xbf16>
    %46 = vector.shape_cast %45 : vector<8x16xbf16> to vector<1x8x16xbf16>
    %47 = vector.broadcast %46 : vector<1x8x16xbf16> to vector<2x8x16xbf16>
    %48 = arith.truncf %39 : vector<2x16x32xf32> to vector<2x16x32xbf16>
    "tpu.trace_start"() <{level = 10 : i32, message = "bos,bsd->bod"}> : () -> ()
    %cst_17 = arith.constant dense<0.000000e+00> : vector<2x8x32xf32>
    %49 = tpu.matmul %47, %48, %cst_17 {dimension_numbers = #tpu.dot_dimension_numbers<[2], [1], [1], [2], [0, 0, 0, 1, 1, 2], [0], [0]>} : vector<2x8x16xbf16>, vector<2x16x32xbf16>, vector<2x8x32xf32> -> vector<2x8x32xf32>
    "tpu.trace_stop"() : () -> ()
    %c0_18 = arith.constant 0 : index
    %c0_19 = arith.constant 0 : index
    %c0_20 = arith.constant 0 : index
    %50 = vector.load %arg6[%c0_18, %c0_19, %c0_20] : memref<2x8x1xf32, #tpu.memory_space<vmem>>, vector<1x8x1xf32>
    %51 = vector.shape_cast %50 : vector<1x8x1xf32> to vector<8x1xf32>
    %52 = vector.shape_cast %51 : vector<8x1xf32> to vector<1x8x1xf32>
    %53 = vector.broadcast %52 : vector<1x8x1xf32> to vector<2x8x32xf32>
    %54 = arith.addf %49, %53 : vector<2x8x32xf32>
    %cst_21 = arith.constant 0.353553385 : f32
    %55 = vector.broadcast %cst_21 : f32 to vector<2x8x32xf32>
    %56 = arith.mulf %54, %55 : vector<2x8x32xf32>
    %57 = arith.truncf %56 : vector<2x8x32xf32> to vector<2x8x32xbf16>
    %58 = arith.truncf %41 : vector<2x16x32xf32> to vector<2x16x32xbf16>
    %59 = arith.truncf %43 : vector<2x16x32xf32> to vector<2x16x32xbf16>
    %60 = vector.extract_strided_slice %57 {offsets = [0, 0, 0], sizes = [2, 8, 8], strides = [1, 1, 1]} : vector<2x8x32xbf16> to vector<2x8x8xbf16>
    %61 = vector.extract_strided_slice %58 {offsets = [0, 0, 0], sizes = [2, 16, 8], strides = [1, 1, 1]} : vector<2x16x32xbf16> to vector<2x16x8xbf16>
    %62 = vector.extract_strided_slice %59 {offsets = [0, 0, 0], sizes = [2, 16, 8], strides = [1, 1, 1]} : vector<2x16x32xbf16> to vector<2x16x8xbf16>
    "tpu.trace_start"() <{level = 10 : i32, message = "bod,bsd->bos"}> : () -> ()
    %cst_22 = arith.constant dense<0.000000e+00> : vector<2x8x16xf32>
    %63 = tpu.matmul %60, %61, %cst_22 {dimension_numbers = #tpu.dot_dimension_numbers<[2], [2], [1], [1], [0, 0, 0, 1, 1, 1], [0], [0]>} : vector<2x8x8xbf16>, vector<2x16x8xbf16>, vector<2x8x16xf32> -> vector<2x8x16xf32>
    "tpu.trace_stop"() : () -> ()
    %cst_23 = arith.constant dense<0xFF800000> : vector<2x8xf32>
    %64 = vector.multi_reduction <maximumf>, %63, %cst_23 [2] : vector<2x8x16xf32> to vector<2x8xf32>
    %65 = vector.shape_cast %64 : vector<2x8xf32> to vector<2x8x1xf32>
    %66 = vector.broadcast %65 : vector<2x8x1xf32> to vector<2x8x16xf32>
    %67 = arith.subf %63, %66 : vector<2x8x16xf32>
    %68 = math.exp %67 : vector<2x8x16xf32>
    %cst_24 = arith.constant dense<0.000000e+00> : vector<2x8xf32>
    %69 = vector.multi_reduction <add>, %68, %cst_24 [2] : vector<2x8x16xf32> to vector<2x8xf32>
    %70 = vector.shape_cast %69 : vector<2x8xf32> to vector<2x8x1xf32>
    %71 = tpu.reciprocal %70 {approx = true} : vector<2x8x1xf32> -> vector<2x8x1xf32>
    %72 = vector.broadcast %71 : vector<2x8x1xf32> to vector<2x8x16xf32>
    %73 = arith.mulf %68, %72 : vector<2x8x16xf32>
    %74 = arith.truncf %73 : vector<2x8x16xf32> to vector<2x8x16xbf16>
    "tpu.trace_start"() <{level = 10 : i32, message = "bos,bsd->bod"}> : () -> ()
    %cst_25 = arith.constant dense<0.000000e+00> : vector<2x8x8xf32>
    %75 = tpu.matmul %74, %62, %cst_25 {dimension_numbers = #tpu.dot_dimension_numbers<[2], [1], [1], [2], [0, 0, 0, 1, 1, 2], [0], [0]>} : vector<2x8x16xbf16>, vector<2x16x8xbf16>, vector<2x8x8xf32> -> vector<2x8x8xf32>
    "tpu.trace_stop"() : () -> ()
    %76 = vector.extract_strided_slice %57 {offsets = [0, 0, 8], sizes = [2, 8, 8], strides = [1, 1, 1]} : vector<2x8x32xbf16> to vector<2x8x8xbf16>
    %77 = vector.extract_strided_slice %58 {offsets = [0, 0, 8], sizes = [2, 16, 8], strides = [1, 1, 1]} : vector<2x16x32xbf16> to vector<2x16x8xbf16>
    %78 = vector.extract_strided_slice %59 {offsets = [0, 0, 8], sizes = [2, 16, 8], strides = [1, 1, 1]} : vector<2x16x32xbf16> to vector<2x16x8xbf16>
    "tpu.trace_start"() <{level = 10 : i32, message = "bod,bsd->bos"}> : () -> ()
    %cst_26 = arith.constant dense<0.000000e+00> : vector<2x8x16xf32>
    %79 = tpu.matmul %76, %77, %cst_26 {dimension_numbers = #tpu.dot_dimension_numbers<[2], [2], [1], [1], [0, 0, 0, 1, 1, 1], [0], [0]>} : vector<2x8x8xbf16>, vector<2x16x8xbf16>, vector<2x8x16xf32> -> vector<2x8x16xf32>
    "tpu.trace_stop"() : () -> ()
    %cst_27 = arith.constant dense<0xFF800000> : vector<2x8xf32>
    %80 = vector.multi_reduction <maximumf>, %79, %cst_27 [2] : vector<2x8x16xf32> to vector<2x8xf32>
    %81 = vector.shape_cast %80 : vector<2x8xf32> to vector<2x8x1xf32>
    %82 = vector.broadcast %81 : vector<2x8x1xf32> to vector<2x8x16xf32>
    %83 = arith.subf %79, %82 : vector<2x8x16xf32>
    %84 = math.exp %83 : vector<2x8x16xf32>
    %cst_28 = arith.constant dense<0.000000e+00> : vector<2x8xf32>
    %85 = vector.multi_reduction <add>, %84, %cst_28 [2] : vector<2x8x16xf32> to vector<2x8xf32>
    %86 = vector.shape_cast %85 : vector<2x8xf32> to vector<2x8x1xf32>
    %87 = tpu.reciprocal %86 {approx = true} : vector<2x8x1xf32> -> vector<2x8x1xf32>
    %88 = vector.broadcast %87 : vector<2x8x1xf32> to vector<2x8x16xf32>
    %89 = arith.mulf %84, %88 : vector<2x8x16xf32>
    %90 = arith.truncf %89 : vector<2x8x16xf32> to vector<2x8x16xbf16>
    "tpu.trace_start"() <{level = 10 : i32, message = "bos,bsd->bod"}> : () -> ()
    %cst_29 = arith.constant dense<0.000000e+00> : vector<2x8x8xf32>
    %91 = tpu.matmul %90, %78, %cst_29 {dimension_numbers = #tpu.dot_dimension_numbers<[2], [1], [1], [2], [0, 0, 0, 1, 1, 2], [0], [0]>} : vector<2x8x16xbf16>, vector<2x16x8xbf16>, vector<2x8x8xf32> -> vector<2x8x8xf32>
    "tpu.trace_stop"() : () -> ()
    %92 = vector.extract_strided_slice %57 {offsets = [0, 0, 16], sizes = [2, 8, 8], strides = [1, 1, 1]} : vector<2x8x32xbf16> to vector<2x8x8xbf16>
    %93 = vector.extract_strided_slice %58 {offsets = [0, 0, 16], sizes = [2, 16, 8], strides = [1, 1, 1]} : vector<2x16x32xbf16> to vector<2x16x8xbf16>
    %94 = vector.extract_strided_slice %59 {offsets = [0, 0, 16], sizes = [2, 16, 8], strides = [1, 1, 1]} : vector<2x16x32xbf16> to vector<2x16x8xbf16>
    "tpu.trace_start"() <{level = 10 : i32, message = "bod,bsd->bos"}> : () -> ()
    %cst_30 = arith.constant dense<0.000000e+00> : vector<2x8x16xf32>
    %95 = tpu.matmul %92, %93, %cst_30 {dimension_numbers = #tpu.dot_dimension_numbers<[2], [2], [1], [1], [0, 0, 0, 1, 1, 1], [0], [0]>} : vector<2x8x8xbf16>, vector<2x16x8xbf16>, vector<2x8x16xf32> -> vector<2x8x16xf32>
    "tpu.trace_stop"() : () -> ()
    %cst_31 = arith.constant dense<0xFF800000> : vector<2x8xf32>
    %96 = vector.multi_reduction <maximumf>, %95, %cst_31 [2] : vector<2x8x16xf32> to vector<2x8xf32>
    %97 = vector.shape_cast %96 : vector<2x8xf32> to vector<2x8x1xf32>
    %98 = vector.broadcast %97 : vector<2x8x1xf32> to vector<2x8x16xf32>
    %99 = arith.subf %95, %98 : vector<2x8x16xf32>
    %100 = math.exp %99 : vector<2x8x16xf32>
    %cst_32 = arith.constant dense<0.000000e+00> : vector<2x8xf32>
    %101 = vector.multi_reduction <add>, %100, %cst_32 [2] : vector<2x8x16xf32> to vector<2x8xf32>
    %102 = vector.shape_cast %101 : vector<2x8xf32> to vector<2x8x1xf32>
    %103 = tpu.reciprocal %102 {approx = true} : vector<2x8x1xf32> -> vector<2x8x1xf32>
    %104 = vector.broadcast %103 : vector<2x8x1xf32> to vector<2x8x16xf32>
    %105 = arith.mulf %100, %104 : vector<2x8x16xf32>
    %106 = arith.truncf %105 : vector<2x8x16xf32> to vector<2x8x16xbf16>
    "tpu.trace_start"() <{level = 10 : i32, message = "bos,bsd->bod"}> : () -> ()
    %cst_33 = arith.constant dense<0.000000e+00> : vector<2x8x8xf32>
    %107 = tpu.matmul %106, %94, %cst_33 {dimension_numbers = #tpu.dot_dimension_numbers<[2], [1], [1], [2], [0, 0, 0, 1, 1, 2], [0], [0]>} : vector<2x8x16xbf16>, vector<2x16x8xbf16>, vector<2x8x8xf32> -> vector<2x8x8xf32>
    "tpu.trace_stop"() : () -> ()
    %108 = vector.extract_strided_slice %57 {offsets = [0, 0, 24], sizes = [2, 8, 8], strides = [1, 1, 1]} : vector<2x8x32xbf16> to vector<2x8x8xbf16>
    %109 = vector.extract_strided_slice %58 {offsets = [0, 0, 24], sizes = [2, 16, 8], strides = [1, 1, 1]} : vector<2x16x32xbf16> to vector<2x16x8xbf16>
    %110 = vector.extract_strided_slice %59 {offsets = [0, 0, 24], sizes = [2, 16, 8], strides = [1, 1, 1]} : vector<2x16x32xbf16> to vector<2x16x8xbf16>
    "tpu.trace_start"() <{level = 10 : i32, message = "bod,bsd->bos"}> : () -> ()
    %cst_34 = arith.constant dense<0.000000e+00> : vector<2x8x16xf32>
    %111 = tpu.matmul %108, %109, %cst_34 {dimension_numbers = #tpu.dot_dimension_numbers<[2], [2], [1], [1], [0, 0, 0, 1, 1, 1], [0], [0]>} : vector<2x8x8xbf16>, vector<2x16x8xbf16>, vector<2x8x16xf32> -> vector<2x8x16xf32>
    "tpu.trace_stop"() : () -> ()
    %cst_35 = arith.constant dense<0xFF800000> : vector<2x8xf32>
    %112 = vector.multi_reduction <maximumf>, %111, %cst_35 [2] : vector<2x8x16xf32> to vector<2x8xf32>
    %113 = vector.shape_cast %112 : vector<2x8xf32> to vector<2x8x1xf32>
    %114 = vector.broadcast %113 : vector<2x8x1xf32> to vector<2x8x16xf32>
    %115 = arith.subf %111, %114 : vector<2x8x16xf32>
    %116 = math.exp %115 : vector<2x8x16xf32>
    %cst_36 = arith.constant dense<0.000000e+00> : vector<2x8xf32>
    %117 = vector.multi_reduction <add>, %116, %cst_36 [2] : vector<2x8x16xf32> to vector<2x8xf32>
    %118 = vector.shape_cast %117 : vector<2x8xf32> to vector<2x8x1xf32>
    %119 = tpu.reciprocal %118 {approx = true} : vector<2x8x1xf32> -> vector<2x8x1xf32>
    %120 = vector.broadcast %119 : vector<2x8x1xf32> to vector<2x8x16xf32>
    %121 = arith.mulf %116, %120 : vector<2x8x16xf32>
    %122 = arith.truncf %121 : vector<2x8x16xf32> to vector<2x8x16xbf16>
    "tpu.trace_start"() <{level = 10 : i32, message = "bos,bsd->bod"}> : () -> ()
    %cst_37 = arith.constant dense<0.000000e+00> : vector<2x8x8xf32>
    %123 = tpu.matmul %122, %110, %cst_37 {dimension_numbers = #tpu.dot_dimension_numbers<[2], [1], [1], [2], [0, 0, 0, 1, 1, 2], [0], [0]>} : vector<2x8x16xbf16>, vector<2x16x8xbf16>, vector<2x8x8xf32> -> vector<2x8x8xf32>
    "tpu.trace_stop"() : () -> ()
    %124 = tpu.concatenate %75, %91, %107, %123 in 2 : vector<2x8x8xf32>, vector<2x8x8xf32>, vector<2x8x8xf32>, vector<2x8x8xf32> -> vector<2x8x32xf32>
    %125 = vector.shape_cast %124 : vector<2x8x32xf32> to vector<16x32xf32>
    %126 = arith.truncf %125 : vector<16x32xf32> to vector<16x32xbf16>
    %c0_38 = arith.constant 0 : index
    %c0_39 = arith.constant 0 : index
    %127 = vector.load %arg7[%c0_38, %c0_39] : memref<32x32xbf16, #tpu.memory_space<vmem>>, vector<32x32xbf16>
    %cst_40 = arith.constant dense<0.000000e+00> : vector<16x32xf32>
    %128 = tpu.matmul %126, %127, %cst_40 {dimension_numbers = #tpu.dot_dimension_numbers<[1], [0], [0], [1], [0, 0, 1, 1], [], []>} : vector<16x32xbf16>, vector<32x32xbf16>, vector<16x32xf32> -> vector<16x32xf32>
    %c1_41 = arith.constant 1 : index
    %c0_42 = arith.constant 0 : index
    %c0_43 = arith.constant 0 : index
    %129 = vector.load %arg5[%c1_41, %c0_42, %c0_43] : memref<2x8x16xbf16, #tpu.memory_space<vmem>>, vector<1x8x16xbf16>
    %130 = vector.shape_cast %129 : vector<1x8x16xbf16> to vector<8x16xbf16>
    %131 = vector.shape_cast %130 : vector<8x16xbf16> to vector<1x8x16xbf16>
    %132 = vector.broadcast %131 : vector<1x8x16xbf16> to vector<2x8x16xbf16>
    %133 = arith.truncf %0 : vector<2x16x16xf32> to vector<2x16x16xbf16>
    "tpu.trace_start"() <{level = 10 : i32, message = "bos,bsd->bod"}> : () -> ()
    %cst_44 = arith.constant dense<0.000000e+00> : vector<2x8x16xf32>
    %134 = tpu.matmul %132, %133, %cst_44 {dimension_numbers = #tpu.dot_dimension_numbers<[2], [1], [1], [2], [0, 0, 0, 1, 1, 2], [0], [0]>} : vector<2x8x16xbf16>, vector<2x16x16xbf16>, vector<2x8x16xf32> -> vector<2x8x16xf32>
    "tpu.trace_stop"() : () -> ()
    %c1_45 = arith.constant 1 : index
    %c0_46 = arith.constant 0 : index
    %c0_47 = arith.constant 0 : index
    %135 = vector.load %arg6[%c1_45, %c0_46, %c0_47] : memref<2x8x1xf32, #tpu.memory_space<vmem>>, vector<1x8x1xf32>
    %136 = vector.shape_cast %135 : vector<1x8x1xf32> to vector<8x1xf32>
    %137 = vector.shape_cast %136 : vector<8x1xf32> to vector<1x8x1xf32>
    %138 = vector.broadcast %137 : vector<1x8x1xf32> to vector<2x8x16xf32>
    %139 = arith.addf %134, %138 : vector<2x8x16xf32>
    %140 = vector.shape_cast %139 : vector<2x8x16xf32> to vector<16x16xf32>
    %141 = arith.truncf %140 : vector<16x16xf32> to vector<16x16xbf16>
    %c0_48 = arith.constant 0 : index
    %c0_49 = arith.constant 0 : index
    %142 = vector.load %arg8[%c0_48, %c0_49] : memref<16x32xbf16, #tpu.memory_space<vmem>>, vector<16x32xbf16>
    %cst_50 = arith.constant dense<0.000000e+00> : vector<16x32xf32>
    %143 = tpu.matmul %141, %142, %cst_50 {dimension_numbers = #tpu.dot_dimension_numbers<[1], [0], [0], [1], [0, 0, 1, 1], [], []>} : vector<16x16xbf16>, vector<16x32xbf16>, vector<16x32xf32> -> vector<16x32xf32>
    %144 = arith.addf %128, %143 : vector<16x32xf32>
    %c0_51 = arith.constant 0 : index
    %c0_52 = arith.constant 0 : index
    %145 = vector.load %arg9[%c0_51, %c0_52] : memref<1x32xf32, #tpu.memory_space<vmem>>, vector<1x32xf32>
    %146 = vector.shape_cast %145 : vector<1x32xf32> to vector<32xf32>
    %147 = vector.shape_cast %146 : vector<32xf32> to vector<1x32xf32>
    %148 = vector.broadcast %147 : vector<1x32xf32> to vector<16x32xf32>
    %149 = arith.addf %144, %148 : vector<16x32xf32>
    %c0_53 = arith.constant 0 : index
    %c0_54 = arith.constant 0 : index
    %150 = vector.load %arg10[%c0_53, %c0_54] : memref<2x32xf32, #tpu.memory_space<vmem>>, vector<1x32xf32>
    %151 = vector.shape_cast %150 : vector<1x32xf32> to vector<32xf32>
    %c1_55 = arith.constant 1 : index
    %c0_56 = arith.constant 0 : index
    %152 = vector.load %arg10[%c1_55, %c0_56] : memref<2x32xf32, #tpu.memory_space<vmem>>, vector<1x32xf32>
    %153 = vector.shape_cast %152 : vector<1x32xf32> to vector<32xf32>
    %cst_57 = arith.constant dense<0.000000e+00> : vector<16xf32>
    %154 = vector.multi_reduction <add>, %149, %cst_57 [1] : vector<16x32xf32> to vector<16xf32>
    %155 = vector.shape_cast %154 : vector<16xf32> to vector<16x1xf32>
    %cst_58 = arith.constant 3.200000e+01 : f32
    %156 = vector.broadcast %cst_58 : f32 to vector<16x1xf32>
    %157 = arith.divf %155, %156 : vector<16x1xf32>
    %158 = vector.broadcast %157 : vector<16x1xf32> to vector<16x32xf32>
    %159 = arith.subf %149, %158 : vector<16x32xf32>
    %160 = arith.mulf %159, %159 : vector<16x32xf32>
    %cst_59 = arith.constant dense<0.000000e+00> : vector<16xf32>
    %161 = vector.multi_reduction <add>, %160, %cst_59 [1] : vector<16x32xf32> to vector<16xf32>
    %162 = vector.shape_cast %161 : vector<16xf32> to vector<16x1xf32>
    %cst_60 = arith.constant 3.200000e+01 : f32
    %163 = vector.broadcast %cst_60 : f32 to vector<16x1xf32>
    %164 = arith.divf %162, %163 : vector<16x1xf32>
    %165 = vector.broadcast %157 : vector<16x1xf32> to vector<16x32xf32>
    %166 = arith.subf %149, %165 : vector<16x32xf32>
    %cst_61 = arith.constant 9.99999997E-7 : f32
    %167 = vector.broadcast %cst_61 : f32 to vector<16x1xf32>
    %168 = arith.addf %164, %167 : vector<16x1xf32>
    %169 = math.rsqrt %168 : vector<16x1xf32>
    %170 = vector.broadcast %169 : vector<16x1xf32> to vector<16x32xf32>
    %171 = arith.mulf %166, %170 : vector<16x32xf32>
    %172 = vector.shape_cast %151 : vector<32xf32> to vector<1x32xf32>
    %173 = vector.broadcast %172 : vector<1x32xf32> to vector<16x32xf32>
    %174 = arith.mulf %171, %173 : vector<16x32xf32>
    %175 = vector.shape_cast %153 : vector<32xf32> to vector<1x32xf32>
    %176 = vector.broadcast %175 : vector<1x32xf32> to vector<16x32xf32>
    %177 = arith.addf %174, %176 : vector<16x32xf32>
    %178 = arith.truncf %177 : vector<16x32xf32> to vector<16x32xbf16>
    %c0_62 = arith.constant 0 : index
    %c0_63 = arith.constant 0 : index
    %179 = vector.load %arg11[%c0_62, %c0_63] : memref<32x64xbf16, #tpu.memory_space<vmem>>, vector<32x64xbf16>
    %cst_64 = arith.constant dense<0.000000e+00> : vector<16x64xf32>
    %180 = tpu.matmul %178, %179, %cst_64 {dimension_numbers = #tpu.dot_dimension_numbers<[1], [0], [0], [1], [0, 0, 1, 1], [], []>} : vector<16x32xbf16>, vector<32x64xbf16>, vector<16x64xf32> -> vector<16x64xf32>
    %c0_65 = arith.constant 0 : index
    %c0_66 = arith.constant 0 : index
    %181 = vector.load %arg12[%c0_65, %c0_66] : memref<1x64xf32, #tpu.memory_space<vmem>>, vector<1x64xf32>
    %182 = vector.shape_cast %181 : vector<1x64xf32> to vector<64xf32>
    %183 = vector.shape_cast %182 : vector<64xf32> to vector<1x64xf32>
    %184 = vector.broadcast %183 : vector<1x64xf32> to vector<16x64xf32>
    %185 = arith.addf %180, %184 : vector<16x64xf32>
    %cst_67 = arith.constant 0.000000e+00 : f32
    %186 = vector.broadcast %cst_67 : f32 to vector<16x64xf32>
    %187 = arith.maximumf %185, %186 : vector<16x64xf32>
    %188 = arith.truncf %187 : vector<16x64xf32> to vector<16x64xbf16>
    %c0_68 = arith.constant 0 : index
    %c0_69 = arith.constant 0 : index
    %189 = vector.load %arg13[%c0_68, %c0_69] : memref<64x32xbf16, #tpu.memory_space<vmem>>, vector<64x32xbf16>
    %cst_70 = arith.constant dense<0.000000e+00> : vector<16x32xf32>
    %190 = tpu.matmul %188, %189, %cst_70 {dimension_numbers = #tpu.dot_dimension_numbers<[1], [0], [0], [1], [0, 0, 1, 1], [], []>} : vector<16x64xbf16>, vector<64x32xbf16>, vector<16x32xf32> -> vector<16x32xf32>
    %c0_71 = arith.constant 0 : index
    %c0_72 = arith.constant 0 : index
    %191 = vector.load %arg14[%c0_71, %c0_72] : memref<1x32xf32, #tpu.memory_space<vmem>>, vector<1x32xf32>
    %192 = vector.shape_cast %191 : vector<1x32xf32> to vector<32xf32>
    %193 = vector.shape_cast %192 : vector<32xf32> to vector<1x32xf32>
    %194 = vector.broadcast %193 : vector<1x32xf32> to vector<16x32xf32>
    %195 = arith.addf %190, %194 : vector<16x32xf32>
    %196 = arith.addf %149, %195 : vector<16x32xf32>
    %197 = vector.shape_cast %196 : vector<16x32xf32> to vector<2x8x32xf32>
    %c0_73 = arith.constant 0 : index
    %c0_74 = arith.constant 0 : index
    %c0_75 = arith.constant 0 : index
    %198 = vector.load %arg15[%c0_73, %c0_74, %c0_75] : memref<2x8x32xf32, #tpu.memory_space<vmem>>, vector<2x8x32xf32>
    tpu.vector_store %arg15[%c0_73, %c0_74, %c0_75], %197 {strides = array<i32>} : memref<2x8x32xf32, #tpu.memory_space<vmem>>, vector<2x8x32xf32>,
    return
  }
  func.func @transform_0(%arg0: i32) -> (i32, i32, i32) {
    %c0_i32 = arith.constant 0 : i32
    %c0_i32_0 = arith.constant 0 : i32
    %c0_i32_1 = arith.constant 0 : i32
    return %arg0, %c0_i32, %c0_i32_0 : i32, i32, i32
  }
  func.func @transform_1(%arg0: i32) -> (i32, i32) {
    %c0_i32 = arith.constant 0 : i32
    %c0_i32_0 = arith.constant 0 : i32
    %c0_i32_1 = arith.constant 0 : i32
    return %c0_i32, %c0_i32_0 : i32, i32
  }
  func.func @transform_2(%arg0: i32) -> (i32, i32) {
    %c0_i32 = arith.constant 0 : i32
    %c0_i32_0 = arith.constant 0 : i32
    %c0_i32_1 = arith.constant 0 : i32
    return %c0_i32, %c0_i32_0 : i32, i32
  }
  func.func @transform_3(%arg0: i32) -> (i32, i32) {
    %c0_i32 = arith.constant 0 : i32
    %c0_i32_0 = arith.constant 0 : i32
    %c0_i32_1 = arith.constant 0 : i32
    return %c0_i32, %c0_i32_0 : i32, i32
  }
  func.func @transform_4(%arg0: i32) -> (i32, i32, i32) {
    %c0_i32 = arith.constant 0 : i32
    %c0_i32_0 = arith.constant 0 : i32
    %c0_i32_1 = arith.constant 0 : i32
    %c0_i32_2 = arith.constant 0 : i32
    return %c0_i32, %c0_i32_0, %c0_i32_1 : i32, i32, i32
  }
  func.func @transform_5(%arg0: i32) -> (i32, i32, i32) {
    %c0_i32 = arith.constant 0 : i32
    %c0_i32_0 = arith.constant 0 : i32
    %c0_i32_1 = arith.constant 0 : i32
    %c0_i32_2 = arith.constant 0 : i32
    return %c0_i32, %c0_i32_0, %c0_i32_1 : i32, i32, i32
  }
  func.func @transform_6(%arg0: i32) -> (i32, i32) {
    %c0_i32 = arith.constant 0 : i32
    %c0_i32_0 = arith.constant 0 : i32
    %c0_i32_1 = arith.constant 0 : i32
    return %c0_i32, %c0_i32_0 : i32, i32
  }
  func.func @transform_7(%arg0: i32) -> (i32, i32) {
    %c0_i32 = arith.constant 0 : i32
    %c0_i32_0 = arith.constant 0 : i32
    %c0_i32_1 = arith.constant 0 : i32
    return %c0_i32, %c0_i32_0 : i32, i32
  }
  func.func @transform_8(%arg0: i32) -> (i32, i32) {
    %c0_i32 = arith.constant 0 : i32
    %c0_i32_0 = arith.constant 0 : i32
    %c0_i32_1 = arith.constant 0 : i32
    return %c0_i32, %c0_i32_0 : i32, i32
  }
  func.func @transform_9(%arg0: i32) -> (i32, i32) {
    %c0_i32 = arith.constant 0 : i32
    %c0_i32_0 = arith.constant 0 : i32
    %c0_i32_1 = arith.constant 0 : i32
    return %c0_i32, %c0_i32_0 : i32, i32
  }
  func.func @transform_10(%arg0: i32) -> (i32, i32) {
    %c0_i32 = arith.constant 0 : i32
    %c0_i32_0 = arith.constant 0 : i32
    %c0_i32_1 = arith.constant 0 : i32
    return %c0_i32, %c0_i32_0 : i32, i32
  }
  func.func @transform_11(%arg0: i32) -> (i32, i32) {
    %c0_i32 = arith.constant 0 : i32
    %c0_i32_0 = arith.constant 0 : i32
    %c0_i32_1 = arith.constant 0 : i32
    return %c0_i32, %c0_i32_0 : i32, i32
  }
  func.func @transform_12(%arg0: i32) -> (i32, i32) {
    %c0_i32 = arith.constant 0 : i32
    %c0_i32_0 = arith.constant 0 : i32
    %c0_i32_1 = arith.constant 0 : i32
    return %c0_i32, %c0_i32_0 : i32, i32
  }
  func.func @transform_13(%arg0: i32) -> (i32, i32) {
    %c0_i32 = arith.constant 0 : i32
    %c0_i32_0 = arith.constant 0 : i32
    %c0_i32_1 = arith.constant 0 : i32
    return %c0_i32, %c0_i32_0 : i32, i32
  }
  func.func @transform_14(%arg0: i32) -> (i32, i32, i32) {
    %c0_i32 = arith.constant 0 : i32
    %c0_i32_0 = arith.constant 0 : i32
    %c0_i32_1 = arith.constant 0 : i32
    return %arg0, %c0_i32, %c0_i32_0 : i32, i32, i32
  }
}

</mosaic_0001>

<llo_original>
// kernel: tpu_custom_call.1
$region0: #{tpu_custom_call.1}
  #allocation0 [shape = 'u32[]', space=smem, size = 0x4, offset = 0x4, fixed_abs, tag = 'smem constant byte address 0x4 - core index']
  #allocation1 [shape = 'u32[144,128]{1,0:T(1,128)}', space=vmem, size = 0x12000, scoped, tag = 'internal scratch']
  %s0 = inlined_call_operand.vmem [shape: f32[2,16,16], index: 0, kind: input, shape index: {}]
  %s1 = inlined_call_operand.hbm [shape: f32[2,16], index: 1, kind: input, shape index: {}]
  %s2 = inlined_call_operand.hbm [shape: bf16[16,128], index: 2, kind: input, shape index: {}]
  %s3 = inlined_call_operand.hbm [shape: f32[1,128], index: 3, kind: input, shape index: {}]
  %s4 = inlined_call_operand.hbm [shape: bf16[2,8,16], index: 4, kind: input, shape index: {}]
  %s5 = inlined_call_operand.vmem [shape: f32[2,8,1], index: 5, kind: input, shape index: {}]
  %s6 = inlined_call_operand.vmem [shape: bf16[32,32], index: 6, kind: input, shape index: {}]
  %s7 = inlined_call_operand.hbm [shape: bf16[16,32], index: 7, kind: input, shape index: {}]
  %s8 = inlined_call_operand.hbm [shape: f32[1,32], index: 8, kind: input, shape index: {}]
  %s9 = inlined_call_operand.vmem [shape: f32[2,32], index: 9, kind: input, shape index: {}]
  %s10 = inlined_call_operand.vmem [shape: bf16[32,64], index: 10, kind: input, shape index: {}]
  %s11 = inlined_call_operand.vmem [shape: f32[1,64], index: 11, kind: input, shape index: {}]
  %s12 = inlined_call_operand.vmem [shape: bf16[64,32], index: 12, kind: input, shape index: {}]
  %s13 = inlined_call_operand.vmem [shape: f32[1,32], index: 13, kind: input, shape index: {}]
  %s14 = inlined_call_operand.hbm [shape: f32[2,8,32], index: 14, kind: output, shape index: {}]
  %s15 = sld [smem:[#allocation0]]
  $region90: #{tpu_custom_call.1} parent=0
    _
  %s17 = ssub.s32 1, %s15
  %s18 = scalar_select 0, %s17, %s15
  $region1: #{tpu_custom_call.1} parent=0
    #allocation2 [shape = 'u8[1024]{0}', space=vmem, size = 0x400, scoped, tag = 'input window, operand 1, single buffered']
    #allocation3 [shape = 's32[1]{0}', space=sflag, size = 0x4, scoped, tag = 'scoped memory for tpu_custom_call.1']
    #allocation4 [shape = 's32[1]{0}', space=sflag, size = 0x4, scoped, tag = 'scoped memory for tpu_custom_call.1']
    #allocation5 [shape = 'u8[4096]{0}', space=vmem, size = 0x1000, scoped, tag = 'input window, operand 2, single buffered']
    #allocation6 [shape = 's32[1]{0}', space=sflag, size = 0x4, scoped, tag = 'scoped memory for tpu_custom_call.1']
    #allocation7 [shape = 'u8[512]{0}', space=vmem, size = 0x400, scoped, tag = 'input window, operand 3, single buffered']
    #allocation8 [shape = 'u8[4096]{0}', space=vmem, size = 0x1000, scoped, tag = 'input window, operand 4, single buffered']
    #allocation9 [shape = 's32[1]{0}', space=sflag, size = 0x4, scoped, tag = 'scoped memory for tpu_custom_call.1']
    #allocation10 [shape = 'u8[4096]{0}', space=vmem, size = 0x1000, scoped, tag = 'input window, operand 7, single buffered']
    #allocation11 [shape = 'u8[512]{0}', space=vmem, size = 0x400, scoped, tag = 'input window, operand 8, single buffered']
    #allocation12 [shape = 's32[1]{0}', space=sflag, size = 0x4, scoped, tag = 'scoped memory for tpu_custom_call.1']
    #allocation13 [shape = 'u8[8192]{0}', space=vmem, size = 0x2000, scoped, tag = 'output window, operand 0, single buffered']
    %19 = vsyncpa [#allocation3], 0
    %20 = vsyncpa [#allocation6], 0
    %21 = vsyncpa [#allocation9], 0
    %22 = vsyncpa [#allocation12], 0
    %23 = vsyncpa [#allocation4], 0
    // Predicated region
    $region2: #{tpu_custom_call.1} parent=1 // pred_check
      _
    $region3: #{tpu_custom_call.1} parent=1 // pred_check_branch
      %25 = sbr.rel (0) target = $region5
    $region4: #{tpu_custom_call.1} parent=1 // pred_region
      _
    $region5: #{tpu_custom_call.1} parent=1 // pred_fallthru
      _
    // Predicated region
    $region6: #{tpu_custom_call.1} parent=1 // pred_check
      _
    $region7: #{tpu_custom_call.1} parent=1 // pred_check_branch
      %27 = sbr.rel (0) target = $region9
    $region8: #{tpu_custom_call.1} parent=1 // pred_region
      %s29 = ssub.s32 32, 32
      %30 = vsyncadd [#allocation3], %s29
      %s32 = sshll.u32 [#allocation2], 4
      %s33 = int_to_ptr.vmem [resolvable:$true] %s32
      %35 = dma.hbm_to_vmem [thread:$0]  %s1, 32, %s33, [#allocation3]
    $region9: #{tpu_custom_call.1} parent=1 // pred_fallthru
      _
    // Predicated region
    $region10: #{tpu_custom_call.1} parent=1 // pred_check
      _
    $region11: #{tpu_custom_call.1} parent=1 // pred_check_branch
      %37 = sbr.rel (0) target = $region13
    $region12: #{tpu_custom_call.1} parent=1 // pred_region
      %s39 = ssub.s32 128, 128
      %40 = vsyncadd [#allocation6], %s39
      %s41 = sshll.u32 [#allocation5], 4
      %s42 = int_to_ptr.vmem [resolvable:$true] %s41
      %47 = dma.hbm_to_vmem [thread:$0]  %s2, 128, %s42, [#allocation6], 64, 64, 4
    $region13: #{tpu_custom_call.1} parent=1 // pred_fallthru
      _
    // Predicated region
    $region14: #{tpu_custom_call.1} parent=1 // pred_check
      _
    $region15: #{tpu_custom_call.1} parent=1 // pred_check_branch
      %49 = sbr.rel (0) target = $region17
    $region16: #{tpu_custom_call.1} parent=1 // pred_region
      %s51 = ssub.s32 16, 16
      %52 = vsyncadd [#allocation6], %s51
      %s54 = sshll.u32 [#allocation7], 4
      %s55 = int_to_ptr.vmem [resolvable:$true] %s54
      %57 = dma.hbm_to_vmem [thread:$0]  %s3, 16, %s55, [#allocation6]
    $region17: #{tpu_custom_call.1} parent=1 // pred_fallthru
      _
    // Predicated region
    $region18: #{tpu_custom_call.1} parent=1 // pred_check
      _
    $region19: #{tpu_custom_call.1} parent=1 // pred_check_branch
      %59 = sbr.rel (0) target = $region21
    $region20: #{tpu_custom_call.1} parent=1 // pred_region
      %s61 = ssub.s32 128, 128
      %62 = vsyncadd [#allocation9], %s61
      %s63 = sshll.u32 [#allocation8], 4
      %s64 = int_to_ptr.vmem [resolvable:$true] %s63
      %69 = dma.hbm_to_vmem [thread:$0]  %s4, 128, %s64, [#allocation9], 64, 64, 4
    $region21: #{tpu_custom_call.1} parent=1 // pred_fallthru
      _
    // Predicated region
    $region22: #{tpu_custom_call.1} parent=1 // pred_check
      _
    $region23: #{tpu_custom_call.1} parent=1 // pred_check_branch
      %71 = sbr.rel (0) target = $region25
    $region24: #{tpu_custom_call.1} parent=1 // pred_region
      _
    $region25: #{tpu_custom_call.1} parent=1 // pred_fallthru
      _
    // Predicated region
    $region26: #{tpu_custom_call.1} parent=1 // pred_check
      _
    $region27: #{tpu_custom_call.1} parent=1 // pred_check_branch
      %73 = sbr.rel (0) target = $region29
    $region28: #{tpu_custom_call.1} parent=1 // pred_region
      _
    $region29: #{tpu_custom_call.1} parent=1 // pred_fallthru
      _
    // Predicated region
    $region30: #{tpu_custom_call.1} parent=1 // pred_check
      _
    $region31: #{tpu_custom_call.1} parent=1 // pred_check_branch
      %75 = sbr.rel (0) target = $region33
    $region32: #{tpu_custom_call.1} parent=1 // pred_region
      %s77 = ssub.s32 128, 128
      %78 = vsyncadd [#allocation9], %s77
      %s79 = sshll.u32 [#allocation10], 4
      %s80 = int_to_ptr.vmem [resolvable:$true] %s79
      %85 = dma.hbm_to_vmem [thread:$0]  %s7, 128, %s80, [#allocation9], 64, 64, 4
    $region33: #{tpu_custom_call.1} parent=1 // pred_fallthru
      _
    // Predicated region
    $region34: #{tpu_custom_call.1} parent=1 // pred_check
      _
    $region35: #{tpu_custom_call.1} parent=1 // pred_check_branch
      %87 = sbr.rel (0) target = $region37
    $region36: #{tpu_custom_call.1} parent=1 // pred_region
      %s89 = ssub.s32 16, 16
      %90 = vsyncadd [#allocation12], %s89
      %s92 = sshll.u32 [#allocation11], 4
      %s93 = int_to_ptr.vmem [resolvable:$true] %s92
      %95 = dma.hbm_to_vmem [thread:$0]  %s8, 16, %s93, [#allocation12]
    $region37: #{tpu_custom_call.1} parent=1 // pred_fallthru
      _
    // Predicated region
    $region38: #{tpu_custom_call.1} parent=1 // pred_check
      _
    $region39: #{tpu_custom_call.1} parent=1 // pred_check_branch
      %97 = sbr.rel (0) target = $region41
    $region40: #{tpu_custom_call.1} parent=1 // pred_region
      _
    $region41: #{tpu_custom_call.1} parent=1 // pred_fallthru
      _
    // Predicated region
    $region42: #{tpu_custom_call.1} parent=1 // pred_check
      _
    $region43: #{tpu_custom_call.1} parent=1 // pred_check_branch
      %99 = sbr.rel (0) target = $region45
    $region44: #{tpu_custom_call.1} parent=1 // pred_region
      _
    $region45: #{tpu_custom_call.1} parent=1 // pred_fallthru
      _
    // Predicated region
    $region46: #{tpu_custom_call.1} parent=1 // pred_check
      _
    $region47: #{tpu_custom_call.1} parent=1 // pred_check_branch
      %101 = sbr.rel (0) target = $region49
    $region48: #{tpu_custom_call.1} parent=1 // pred_region
      _
    $region49: #{tpu_custom_call.1} parent=1 // pred_fallthru
      _
    // Predicated region
    $region50: #{tpu_custom_call.1} parent=1 // pred_check
      _
    $region51: #{tpu_custom_call.1} parent=1 // pred_check_branch
      %103 = sbr.rel (0) target = $region53
    $region52: #{tpu_custom_call.1} parent=1 // pred_region
      _
    $region53: #{tpu_custom_call.1} parent=1 // pred_fallthru
      _
    // Predicated region
    $region54: #{tpu_custom_call.1} parent=1 // pred_check
      _
    $region55: #{tpu_custom_call.1} parent=1 // pred_check_branch
      %105 = sbr.rel (0) target = $region57
    $region56: #{tpu_custom_call.1} parent=1 // pred_region
      _
    $region57: #{tpu_custom_call.1} parent=1 // pred_fallthru
      _
    // Predicated region
    $region58: #{tpu_custom_call.1} parent=1 // pred_check
      _
    $region59: #{tpu_custom_call.1} parent=1 // pred_check_branch
      %107 = sbr.rel (0) target = $region61
    $region60: #{tpu_custom_call.1} parent=1 // pred_region
      %108 = dma.done [#allocation3], 32
    $region61: #{tpu_custom_call.1} parent=1 // pred_fallthru
      _
    // Predicated region
    $region62: #{tpu_custom_call.1} parent=1 // pred_check
      _
    $region63: #{tpu_custom_call.1} parent=1 // pred_check_branch
      %110 = sbr.rel (0) target = $region65
    $region64: #{tpu_custom_call.1} parent=1 // pred_region
      %111 = dma.done [#allocation6], 128
    $region65: #{tpu_custom_call.1} parent=1 // pred_fallthru
      _
    // Predicated region
    $region66: #{tpu_custom_call.1} parent=1 // pred_check
      _
    $region67: #{tpu_custom_call.1} parent=1 // pred_check_branch
      %113 = sbr.rel (0) target = $region69
    $region68: #{tpu_custom_call.1} parent=1 // pred_region
      %114 = dma.done [#allocation6], 16
    $region69: #{tpu_custom_call.1} parent=1 // pred_fallthru
      _
    // Predicated region
    $region70: #{tpu_custom_call.1} parent=1 // pred_check
      _
    $region71: #{tpu_custom_call.1} parent=1 // pred_check_branch
      %116 = sbr.rel (0) target = $region73
    $region72: #{tpu_custom_call.1} parent=1 // pred_region
      %117 = dma.done [#allocation9], 128
    $region73: #{tpu_custom_call.1} parent=1 // pred_fallthru
      _
    // Predicated region
    $region74: #{tpu_custom_call.1} parent=1 // pred_check
      _
    $region75: #{tpu_custom_call.1} parent=1 // pred_check_branch
      %119 = sbr.rel (0) target = $region77
    $region76: #{tpu_custom_call.1} parent=1 // pred_region
      %120 = dma.done [#allocation9], 128
    $region77: #{tpu_custom_call.1} parent=1 // pred_fallthru
      _
    // Predicated region
    $region78: #{tpu_custom_call.1} parent=1 // pred_check
      _
    $region79: #{tpu_custom_call.1} parent=1 // pred_check_branch
      %122 = sbr.rel (0) target = $region81
    $region80: #{tpu_custom_call.1} parent=1 // pred_region
      %123 = dma.done [#allocation12], 16
    $region81: #{tpu_custom_call.1} parent=1 // pred_fallthru
      _
    %v125 = vld [vmem:[%s0] sm:$0xff]
    %v126 = vld [vmem:[%s0 + $0x8] sm:$0xff]
    %v127 = vld [vmem:[%s0 + $0x10] sm:$0xff]
    %v128 = vld [vmem:[%s0 + $0x18] sm:$0xff]
    %v129 = vld [vmem:[#allocation2] sm:$0x1]
    %v130 = vld [vmem:[#allocation2 + $0x1] sm:$0x1]
    %vm131 = vcmask 130048
    %v132 = vsel %vm131, %v125, 0.0
    %133 = vadd.xlane.f32.xlu0 %v132
    %v134 = vpop.xlane.xlu0 %133
    %v135 = vsel %vm131, %v126, 0.0
    %136 = vadd.xlane.f32.xlu0 %v135
    %v137 = vpop.xlane.xlu0 %136
    %v138 = vsel %vm131, %v127, 0.0
    %139 = vadd.xlane.f32.xlu0 %v138
    %v140 = vpop.xlane.xlu0 %139
    %v141 = vsel %vm131, %v128, 0.0
    %142 = vadd.xlane.f32.xlu0 %v141
    %v143 = vpop.xlane.xlu0 %142
    %v144 = vrcp.pop 16.0
    %v145 = vmul.f32 %v134, %v144
    %v146 = vmul.f32 %v137, %v144
    %v147 = vmul.f32 %v140, %v144
    %v148 = vmul.f32 %v143, %v144
    %v149 = vsub.f32 %v125, %v145
    %v150 = vsub.f32 %v126, %v146
    %v151 = vsub.f32 %v127, %v147
    %v152 = vsub.f32 %v128, %v148
    %v153 = vmul.f32 %v149, %v149
    %v154 = vmul.f32 %v150, %v150
    %v155 = vmul.f32 %v151, %v151
    %v156 = vmul.f32 %v152, %v152
    %v157 = vsel %vm131, %v153, 0.0
    %158 = vadd.xlane.f32.xlu0 %v157
    %v159 = vpop.xlane.xlu0 %158
    %v160 = vsel %vm131, %v154, 0.0
    %161 = vadd.xlane.f32.xlu0 %v160
    %v162 = vpop.xlane.xlu0 %161
    %v163 = vsel %vm131, %v155, 0.0
    %164 = vadd.xlane.f32.xlu0 %v163
    %v165 = vpop.xlane.xlu0 %164
    %v166 = vsel %vm131, %v156, 0.0
    %167 = vadd.xlane.f32.xlu0 %v166
    %v168 = vpop.xlane.xlu0 %167
    %v169 = vmul.f32 %v159, %v144
    %v170 = vmul.f32 %v162, %v144
    %v171 = vmul.f32 %v165, %v144
    %v172 = vmul.f32 %v168, %v144
    %v173 = vadd.f32 %v169, 1e-06
    %v174 = vadd.f32 %v170, 1e-06
    %v175 = vadd.f32 %v171, 1e-06
    %v176 = vadd.f32 %v172, 1e-06
    %v177 = vrsqrt.pop %v173
    %v178 = vrsqrt.pop %v174
    %v179 = vrsqrt.pop %v175
    %v180 = vrsqrt.pop %v176
    %v181 = vmul.f32 %v149, %v177
    %v182 = vmul.f32 %v150, %v178
    %v183 = vmul.f32 %v151, %v179
    %v184 = vmul.f32 %v152, %v180
    %v185 = vlaneseq
    %v186 = vshrl.u32 %v185, 7
    %v187 = vsub.s32 0, %v186
    %v188 = vrot.slane %v129, %v187
    %v189 = vmul.f32 %v181, %v188
    %v190 = vmul.f32 %v182, %v188
    %v191 = vmul.f32 %v183, %v188
    %v192 = vmul.f32 %v184, %v188
    %v193 = vlaneseq
    %v194 = vshrl.u32 %v193, 7
    %v195 = vsub.s32 0, %v194
    %v196 = vrot.slane %v130, %v195
    %v197 = vadd.f32 %v189, %v196
    %v198 = vadd.f32 %v190, %v196
    %v199 = vadd.f32 %v191, %v196
    %v200 = vadd.f32 %v192, %v196
    %v201 = vpack.c.bf16 %v198, %v197
    %v202 = vpack.c.bf16 %v200, %v199
    %v203 = vld [vmem:[#allocation5] sm:$0xf]
    %v204 = vld [vmem:[#allocation5 + $0x4] sm:$0xf]
    %v205 = vld [vmem:[#allocation7] sm:$0x1]
    %v207 = vlaneseq
    %v208 = vshrl.u32 %v207, 7
    %v209 = vsub.s32 0, %v208
    %v210 = vrot.slane %v205, %v209
    %v214 = vunpack.c.l.b16 %v203
    %v215 = vunpack.c.l.b16 %v204
    %v216 = vpack.c.b16 %v215, %v214
    %v219 = vsel %vm131, %v201, 0
    %v222 = vsel %vm131, %v202, 0
    %224 = vmatprep.subr.bf16.mxu0 0
    %225 = vmatpush1.bf16.msra.mxu0 0
    %226 = vmatprep.subr.bf16.mxu0 0
    %227 = vmatpush1.bf16.msra.mxu0 0
    %228 = vmatprep.subr.bf16.mxu0 0
    %229 = vmatpush1.bf16.msra.mxu0 0
    %230 = vmatprep.subr.bf16.mxu0 0
    %231 = vmatpush1.bf16.msra.mxu0 0
    %232 = vmatprep.subr.bf16.mxu0 0
    %233 = vmatpush1.bf16.msra.mxu0 0
    %234 = vmatprep.subr.bf16.mxu0 0
    %235 = vmatpush1.bf16.msra.mxu0 0
    %236 = vmatprep.subr.bf16.mxu0 0
    %237 = vmatpush1.bf16.msra.mxu0 0
    %238 = vmatprep.subr.bf16.mxu0 0
    %239 = vmatpush1.bf16.msra.mxu0 %v216
    %240 = vmatprep.subr.bf16.mxu0 0
    %241 = vmatpush2.bf16.msra.mxu0 0
    %242 = vmatprep.subr.bf16.mxu0 0
    %243 = vmatpush2.bf16.msra.mxu0 0
    %244 = vmatprep.subr.bf16.mxu0 0
    %245 = vmatpush2.bf16.msra.mxu0 0
    %246 = vmatprep.subr.bf16.mxu0 0
    %247 = vmatpush2.bf16.msra.mxu0 0
    %248 = vmatprep.subr.bf16.mxu0 0
    %249 = vmatpush2.bf16.msra.mxu0 0
    %250 = vmatprep.subr.bf16.mxu0 0
    %251 = vmatpush2.bf16.msra.mxu0 0
    %252 = vmatprep.subr.bf16.mxu0 0
    %253 = vmatpush2.bf16.msra.mxu0 0
    %254 = vmatprep.subr.bf16.mxu0 0
    %255 = vmatpush2.bf16.msra.mxu0 0
    %256 = vmatprep.mubr.bf16.mxu0 0
    %257 = vmatmul.mubr.bf16.gmra.mxu0 %v219
    %v258 = vpop.f32.mrf.mxu0
    %v259 = vadd.f32 %v210, %v258
    %v260 = vpop.f32.mrf.mxu0
    %v261 = vpop.f32.mrf.mxu0
    %v262 = vadd.f32 %v210, %v261
    %v263 = vpop.f32.mrf.mxu0
    %264 = vmatprep.mubr.bf16.mxu0 0
    %265 = vmatmul.mubr.bf16.gmra.mxu0 %v222
    %v266 = vpop.f32.mrf.mxu0
    %v267 = vadd.f32 %v210, %v266
    %v268 = vpop.f32.mrf.mxu0
    %v269 = vpop.f32.mrf.mxu0
    %v270 = vadd.f32 %v210, %v269
    %v271 = vpop.f32.mrf.mxu0
    %272 = vdwg.mxu0
    %v273 = vld [vmem:[#allocation8] sm:$0xf]
    %v274 = vpack.c.bf16 %v262, %v259
    %v275 = vpack.c.bf16 %v270, %v267
    %v276 = vld [vmem:[%s5] sm:$0xff]
    %278 = vset.pattern.permute.xlu0 0
    %279 = vperm.xlu0 %278, %v276
    %v280 = vpop.permute.xlu0 %279
    %v283 = vsel %vm131, %v273, 0
    %285 = vmatprep.subr.bf16.mxu0 0
    %286 = vmatpush1.bf16.msra.mxu0 0
    %287 = vmatprep.subr.bf16.mxu0 0
    %288 = vmatpush1.bf16.msra.mxu0 0
    %289 = vmatprep.subr.bf16.mxu0 0
    %290 = vmatpush1.bf16.msra.mxu0 0
    %291 = vmatprep.subr.bf16.mxu0 0
    %292 = vmatpush1.bf16.msra.mxu0 0
    %293 = vmatprep.subr.bf16.mxu0 0
    %294 = vmatpush1.bf16.msra.mxu0 0
    %295 = vmatprep.subr.bf16.mxu0 0
    %296 = vmatpush1.bf16.msra.mxu0 0
    %297 = vmatprep.subr.bf16.mxu0 0
    %298 = vmatpush1.bf16.msra.mxu0 0
    %299 = vmatprep.subr.bf16.mxu0 0
    %300 = vmatpush1.bf16.msra.mxu0 %v274
    %301 = vmatprep.subr.bf16.mxu0 0
    %302 = vmatpush2.bf16.msra.mxu0 0
    %303 = vmatprep.subr.bf16.mxu0 0
    %304 = vmatpush2.bf16.msra.mxu0 0
    %305 = vmatprep.subr.bf16.mxu0 0
    %306 = vmatpush2.bf16.msra.mxu0 0
    %307 = vmatprep.subr.bf16.mxu0 0
    %308 = vmatpush2.bf16.msra.mxu0 0
    %309 = vmatprep.subr.bf16.mxu0 0
    %310 = vmatpush2.bf16.msra.mxu0 0
    %311 = vmatprep.subr.bf16.mxu0 0
    %312 = vmatpush2.bf16.msra.mxu0 0
    %313 = vmatprep.subr.bf16.mxu0 0
    %314 = vmatpush2.bf16.msra.mxu0 0
    %315 = vmatprep.subr.bf16.mxu0 0
    %316 = vmatpush2.bf16.msra.mxu0 0
    %317 = vmatprep.mubr.bf16.mxu0 0
    %318 = vmatmul.mubr.bf16.gmra.mxu0 %v283
    %v319 = vpop.f32.mrf.mxu0
    %v320 = vadd.f32 %v280, %v319
    %v321 = vpop.f32.mrf.mxu0
    %v322 = vpop.f32.mrf.mxu0
    %v323 = vpop.f32.mrf.mxu0
    %324 = vdwg.mxu0
    %325 = vmatprep.subr.bf16.mxu0 0
    %326 = vmatpush1.bf16.msra.mxu0 0
    %327 = vmatprep.subr.bf16.mxu0 0
    %328 = vmatpush1.bf16.msra.mxu0 0
    %329 = vmatprep.subr.bf16.mxu0 0
    %330 = vmatpush1.bf16.msra.mxu0 0
    %331 = vmatprep.subr.bf16.mxu0 0
    %332 = vmatpush1.bf16.msra.mxu0 0
    %333 = vmatprep.subr.bf16.mxu0 0
    %334 = vmatpush1.bf16.msra.mxu0 0
    %335 = vmatprep.subr.bf16.mxu0 0
    %336 = vmatpush1.bf16.msra.mxu0 0
    %337 = vmatprep.subr.bf16.mxu0 0
    %338 = vmatpush1.bf16.msra.mxu0 0
    %339 = vmatprep.subr.bf16.mxu0 0
    %340 = vmatpush1.bf16.msra.mxu0 %v275
    %341 = vmatprep.subr.bf16.mxu0 0
    %342 = vmatpush2.bf16.msra.mxu0 0
    %343 = vmatprep.subr.bf16.mxu0 0
    %344 = vmatpush2.bf16.msra.mxu0 0
    %345 = vmatprep.subr.bf16.mxu0 0
    %346 = vmatpush2.bf16.msra.mxu0 0
    %347 = vmatprep.subr.bf16.mxu0 0
    %348 = vmatpush2.bf16.msra.mxu0 0
    %349 = vmatprep.subr.bf16.mxu0 0
    %350 = vmatpush2.bf16.msra.mxu0 0
    %351 = vmatprep.subr.bf16.mxu0 0
    %352 = vmatpush2.bf16.msra.mxu0 0
    %353 = vmatprep.subr.bf16.mxu0 0
    %354 = vmatpush2.bf16.msra.mxu0 0
    %355 = vmatprep.subr.bf16.mxu0 0
    %356 = vmatpush2.bf16.msra.mxu0 0
    %357 = vmatprep.mubr.bf16.mxu0 0
    %358 = vmatmul.mubr.bf16.gmra.mxu0 %v283
    %v359 = vpop.f32.mrf.mxu0
    %v360 = vadd.f32 %v280, %v359
    %v361 = vpop.f32.mrf.mxu0
    %v362 = vpop.f32.mrf.mxu0
    %v363 = vpop.f32.mrf.mxu0
    %364 = vdwg.mxu0
    %v365 = vmul.f32 %v320, 0.35355338
    %v366 = vmul.f32 %v360, 0.35355338
    %v367 = vpack.c.bf16 %v365, %v365
    %v368 = vpack.c.bf16 %v366, %v366
    %370 = vrot.lane.b32.xlu0 %v274, 96
    %v371 = vpop.permute.xlu0 %370
    %vm372 = vcmask 64512
    %v374 = vsel %vm372, %v367, 0
    %v377 = vsel %vm372, %v371, 0
    %379 = vmatprep.subr.bf16.mxu0 0
    %380 = vmatpush1.bf16.xpose.msra.mxu0 0
    %381 = vmatprep.subr.bf16.mxu0 0
    %382 = vmatpush1.bf16.xpose.msra.mxu0 0
    %383 = vmatprep.subr.bf16.mxu0 0
    %384 = vmatpush1.bf16.xpose.msra.mxu0 0
    %385 = vmatprep.subr.bf16.mxu0 0
    %386 = vmatpush1.bf16.xpose.msra.mxu0 0
    %387 = vmatprep.subr.bf16.mxu0 0
    %388 = vmatpush1.bf16.xpose.msra.mxu0 0
    %389 = vmatprep.subr.bf16.mxu0 0
    %390 = vmatpush1.bf16.xpose.msra.mxu0 0
    %391 = vmatprep.subr.bf16.mxu0 0
    %392 = vmatpush1.bf16.xpose.msra.mxu0 0
    %393 = vmatprep.subr.bf16.mxu0 0
    %394 = vmatpush1.bf16.xpose.msra.mxu0 %v377
    %395 = vmatprep.subr.bf16.mxu0 0
    %396 = vmatpush2.bf16.xpose.msra.mxu0 0
    %397 = vmatprep.subr.bf16.mxu0 0
    %398 = vmatpush2.bf16.xpose.msra.mxu0 0
    %399 = vmatprep.subr.bf16.mxu0 0
    %400 = vmatpush2.bf16.xpose.msra.mxu0 0
    %401 = vmatprep.subr.bf16.mxu0 0
    %402 = vmatpush2.bf16.xpose.msra.mxu0 0
    %403 = vmatprep.subr.bf16.mxu0 0
    %404 = vmatpush2.bf16.xpose.msra.mxu0 0
    %405 = vmatprep.subr.bf16.mxu0 0
    %406 = vmatpush2.bf16.xpose.msra.mxu0 0
    %407 = vmatprep.subr.bf16.mxu0 0
    %408 = vmatpush2.bf16.xpose.msra.mxu0 0
    %409 = vmatprep.subr.bf16.mxu0 0
    %410 = vmatpush2.bf16.xpose.msra.mxu0 0
    %411 = vmatprep.mubr.bf16.mxu0 0
    %412 = vmatmul.mubr.bf16.gmra.mxu0 %v374
    %v413 = vpop.f32.mrf.mxu0
    %v414 = vadd.f32 0.0, %v413
    %v415 = vpop.f32.mrf.mxu0
    %v416 = vpop.f32.mrf.mxu0
    %v417 = vpop.f32.mrf.mxu0
    %418 = vdwg.mxu0
    %420 = vrot.lane.b32.xlu0 %v275, 96
    %v421 = vpop.permute.xlu0 %420
    %v423 = vsel %vm372, %v368, 0
    %v426 = vsel %vm372, %v421, 0
    %428 = vmatprep.subr.bf16.mxu0 0
    %429 = vmatpush1.bf16.xpose.msra.mxu0 0
    %430 = vmatprep.subr.bf16.mxu0 0
    %431 = vmatpush1.bf16.xpose.msra.mxu0 0
    %432 = vmatprep.subr.bf16.mxu0 0
    %433 = vmatpush1.bf16.xpose.msra.mxu0 0
    %434 = vmatprep.subr.bf16.mxu0 0
    %435 = vmatpush1.bf16.xpose.msra.mxu0 0
    %436 = vmatprep.subr.bf16.mxu0 0
    %437 = vmatpush1.bf16.xpose.msra.mxu0 0
    %438 = vmatprep.subr.bf16.mxu0 0
    %439 = vmatpush1.bf16.xpose.msra.mxu0 0
    %440 = vmatprep.subr.bf16.mxu0 0
    %441 = vmatpush1.bf16.xpose.msra.mxu0 0
    %442 = vmatprep.subr.bf16.mxu0 0
    %443 = vmatpush1.bf16.xpose.msra.mxu0 %v426
    %444 = vmatprep.subr.bf16.mxu0 0
    %445 = vmatpush2.bf16.xpose.msra.mxu0 0
    %446 = vmatprep.subr.bf16.mxu0 0
    %447 = vmatpush2.bf16.xpose.msra.mxu0 0
    %448 = vmatprep.subr.bf16.mxu0 0
    %449 = vmatpush2.bf16.xpose.msra.mxu0 0
    %450 = vmatprep.subr.bf16.mxu0 0
    %451 = vmatpush2.bf16.xpose.msra.mxu0 0
    %452 = vmatprep.subr.bf16.mxu0 0
    %453 = vmatpush2.bf16.xpose.msra.mxu0 0
    %454 = vmatprep.subr.bf16.mxu0 0
    %455 = vmatpush2.bf16.xpose.msra.mxu0 0
    %456 = vmatprep.subr.bf16.mxu0 0
    %457 = vmatpush2.bf16.xpose.msra.mxu0 0
    %458 = vmatprep.subr.bf16.mxu0 0
    %459 = vmatpush2.bf16.xpose.msra.mxu0 0
    %460 = vmatprep.mubr.bf16.mxu0 0
    %461 = vmatmul.mubr.bf16.gmra.mxu0 %v423
    %v462 = vpop.f32.mrf.mxu0
    %v463 = vadd.f32 0.0, %v462
    %v464 = vpop.f32.mrf.mxu0
    %v465 = vpop.f32.mrf.mxu0
    %v466 = vpop.f32.mrf.mxu0
    %467 = vdwg.mxu0
    %v468 = vsel %vm131, %v414, -inf
    %469 = vmax.xlane.f32.xlu0 %v468
    %v470 = vpop.xlane.xlu0 %469
    %v471 = vsel %vm131, %v463, -inf
    %472 = vmax.xlane.f32.xlu0 %v471
    %v473 = vpop.xlane.xlu0 %472
    %v474 = vsub.f32 %v414, %v470
    %v475 = vsub.f32 %v463, %v473
    %v476 = vmul.f32 %v474, 1.442695
    %v477 = vpow.pop %v476
    %v478 = vmul.f32 %v475, 1.442695
    %v479 = vpow.pop %v478
    %v480 = vsel %vm131, %v477, 0.0
    %481 = vadd.xlane.f32.xlu0 %v480
    %v482 = vpop.xlane.xlu0 %481
    %v483 = vsel %vm131, %v479, 0.0
    %484 = vadd.xlane.f32.xlu0 %v483
    %v485 = vpop.xlane.xlu0 %484
    %v486 = vrcp.pop %v482
    %v487 = vrcp.pop %v485
    %v488 = vmul.f32 %v477, %v486
    %v489 = vmul.f32 %v479, %v487
    %v490 = vpack.c.bf16 %v488, %v488
    %v491 = vpack.c.bf16 %v489, %v489
    %492 = vrot.lane.b32.xlu0 %v274, 64
    %v493 = vpop.permute.xlu0 %492
    %v496 = vsel %vm131, %v490, 0
    %498 = vmatprep.subr.bf16.mxu0 0
    %499 = vmatpush1.bf16.msra.mxu0 0
    %500 = vmatprep.subr.bf16.mxu0 0
    %501 = vmatpush1.bf16.msra.mxu0 0
    %502 = vmatprep.subr.bf16.mxu0 0
    %503 = vmatpush1.bf16.msra.mxu0 0
    %504 = vmatprep.subr.bf16.mxu0 0
    %505 = vmatpush1.bf16.msra.mxu0 0
    %506 = vmatprep.subr.bf16.mxu0 0
    %507 = vmatpush1.bf16.msra.mxu0 0
    %508 = vmatprep.subr.bf16.mxu0 0
    %509 = vmatpush1.bf16.msra.mxu0 0
    %510 = vmatprep.subr.bf16.mxu0 0
    %511 = vmatpush1.bf16.msra.mxu0 0
    %512 = vmatprep.subr.bf16.mxu0 0
    %513 = vmatpush1.bf16.msra.mxu0 %v493
    %514 = vmatprep.subr.bf16.mxu0 0
    %515 = vmatpush2.bf16.msra.mxu0 0
    %516 = vmatprep.subr.bf16.mxu0 0
    %517 = vmatpush2.bf16.msra.mxu0 0
    %518 = vmatprep.subr.bf16.mxu0 0
    %519 = vmatpush2.bf16.msra.mxu0 0
    %520 = vmatprep.subr.bf16.mxu0 0
    %521 = vmatpush2.bf16.msra.mxu0 0
    %522 = vmatprep.subr.bf16.mxu0 0
    %523 = vmatpush2.bf16.msra.mxu0 0
    %524 = vmatprep.subr.bf16.mxu0 0
    %525 = vmatpush2.bf16.msra.mxu0 0
    %526 = vmatprep.subr.bf16.mxu0 0
    %527 = vmatpush2.bf16.msra.mxu0 0
    %528 = vmatprep.subr.bf16.mxu0 0
    %529 = vmatpush2.bf16.msra.mxu0 0
    %530 = vmatprep.mubr.bf16.mxu0 0
    %531 = vmatmul.mubr.bf16.gmra.mxu0 %v496
    %v532 = vpop.f32.mrf.mxu0
    %v533 = vadd.f32 0.0, %v532
    %v534 = vpop.f32.mrf.mxu0
    %v535 = vpop.f32.mrf.mxu0
    %v536 = vpop.f32.mrf.mxu0
    %537 = vdwg.mxu0
    %538 = vrot.lane.b32.xlu0 %v275, 64
    %v539 = vpop.permute.xlu0 %538
    %v542 = vsel %vm131, %v491, 0
    %544 = vmatprep.subr.bf16.mxu0 0
    %545 = vmatpush1.bf16.msra.mxu0 0
    %546 = vmatprep.subr.bf16.mxu0 0
    %547 = vmatpush1.bf16.msra.mxu0 0
    %548 = vmatprep.subr.bf16.mxu0 0
    %549 = vmatpush1.bf16.msra.mxu0 0
    %550 = vmatprep.subr.bf16.mxu0 0
    %551 = vmatpush1.bf16.msra.mxu0 0
    %552 = vmatprep.subr.bf16.mxu0 0
    %553 = vmatpush1.bf16.msra.mxu0 0
    %554 = vmatprep.subr.bf16.mxu0 0
    %555 = vmatpush1.bf16.msra.mxu0 0
    %556 = vmatprep.subr.bf16.mxu0 0
    %557 = vmatpush1.bf16.msra.mxu0 0
    %558 = vmatprep.subr.bf16.mxu0 0
    %559 = vmatpush1.bf16.msra.mxu0 %v539
    %560 = vmatprep.subr.bf16.mxu0 0
    %561 = vmatpush2.bf16.msra.mxu0 0
    %562 = vmatprep.subr.bf16.mxu0 0
    %563 = vmatpush2.bf16.msra.mxu0 0
    %564 = vmatprep.subr.bf16.mxu0 0
    %565 = vmatpush2.bf16.msra.mxu0 0
    %566 = vmatprep.subr.bf16.mxu0 0
    %567 = vmatpush2.bf16.msra.mxu0 0
    %568 = vmatprep.subr.bf16.mxu0 0
    %569 = vmatpush2.bf16.msra.mxu0 0
    %570 = vmatprep.subr.bf16.mxu0 0
    %571 = vmatpush2.bf16.msra.mxu0 0
    %572 = vmatprep.subr.bf16.mxu0 0
    %573 = vmatpush2.bf16.msra.mxu0 0
    %574 = vmatprep.subr.bf16.mxu0 0
    %575 = vmatpush2.bf16.msra.mxu0 0
    %576 = vmatprep.mubr.bf16.mxu0 0
    %577 = vmatmul.mubr.bf16.gmra.mxu0 %v542
    %v578 = vpop.f32.mrf.mxu0
    %v579 = vadd.f32 0.0, %v578
    %v580 = vpop.f32.mrf.mxu0
    %v581 = vpop.f32.mrf.mxu0
    %v582 = vpop.f32.mrf.mxu0
    %583 = vdwg.mxu0
    %585 = vrot.lane.b32.xlu0 %v367, 120
    %v586 = vpop.permute.xlu0 %585
    %587 = vrot.lane.b32.xlu0 %v274, 88
    %v588 = vpop.permute.xlu0 %587
    %v590 = vsel %vm372, %v586, 0
    %v593 = vsel %vm372, %v588, 0
    %595 = vmatprep.subr.bf16.mxu0 0
    %596 = vmatpush1.bf16.xpose.msra.mxu0 0
    %597 = vmatprep.subr.bf16.mxu0 0
    %598 = vmatpush1.bf16.xpose.msra.mxu0 0
    %599 = vmatprep.subr.bf16.mxu0 0
    %600 = vmatpush1.bf16.xpose.msra.mxu0 0
    %601 = vmatprep.subr.bf16.mxu0 0
    %602 = vmatpush1.bf16.xpose.msra.mxu0 0
    %603 = vmatprep.subr.bf16.mxu0 0
    %604 = vmatpush1.bf16.xpose.msra.mxu0 0
    %605 = vmatprep.subr.bf16.mxu0 0
    %606 = vmatpush1.bf16.xpose.msra.mxu0 0
    %607 = vmatprep.subr.bf16.mxu0 0
    %608 = vmatpush1.bf16.xpose.msra.mxu0 0
    %609 = vmatprep.subr.bf16.mxu0 0
    %610 = vmatpush1.bf16.xpose.msra.mxu0 %v593
    %611 = vmatprep.subr.bf16.mxu0 0
    %612 = vmatpush2.bf16.xpose.msra.mxu0 0
    %613 = vmatprep.subr.bf16.mxu0 0
    %614 = vmatpush2.bf16.xpose.msra.mxu0 0
    %615 = vmatprep.subr.bf16.mxu0 0
    %616 = vmatpush2.bf16.xpose.msra.mxu0 0
    %617 = vmatprep.subr.bf16.mxu0 0
    %618 = vmatpush2.bf16.xpose.msra.mxu0 0
    %619 = vmatprep.subr.bf16.mxu0 0
    %620 = vmatpush2.bf16.xpose.msra.mxu0 0
    %621 = vmatprep.subr.bf16.mxu0 0
    %622 = vmatpush2.bf16.xpose.msra.mxu0 0
    %623 = vmatprep.subr.bf16.mxu0 0
    %624 = vmatpush2.bf16.xpose.msra.mxu0 0
    %625 = vmatprep.subr.bf16.mxu0 0
    %626 = vmatpush2.bf16.xpose.msra.mxu0 0
    %627 = vmatprep.mubr.bf16.mxu0 0
    %628 = vmatmul.mubr.bf16.gmra.mxu0 %v590
    %v629 = vpop.f32.mrf.mxu0
    %v630 = vadd.f32 0.0, %v629
    %v631 = vpop.f32.mrf.mxu0
    %v632 = vpop.f32.mrf.mxu0
    %v633 = vpop.f32.mrf.mxu0
    %634 = vdwg.mxu0
    %636 = vrot.lane.b32.xlu0 %v368, 120
    %v637 = vpop.permute.xlu0 %636
    %638 = vrot.lane.b32.xlu0 %v275, 88
    %v639 = vpop.permute.xlu0 %638
    %v641 = vsel %vm372, %v637, 0
    %v644 = vsel %vm372, %v639, 0
    %646 = vmatprep.subr.bf16.mxu0 0
    %647 = vmatpush1.bf16.xpose.msra.mxu0 0
    %648 = vmatprep.subr.bf16.mxu0 0
    %649 = vmatpush1.bf16.xpose.msra.mxu0 0
    %650 = vmatprep.subr.bf16.mxu0 0
    %651 = vmatpush1.bf16.xpose.msra.mxu0 0
    %652 = vmatprep.subr.bf16.mxu0 0
    %653 = vmatpush1.bf16.xpose.msra.mxu0 0
    %654 = vmatprep.subr.bf16.mxu0 0
    %655 = vmatpush1.bf16.xpose.msra.mxu0 0
    %656 = vmatprep.subr.bf16.mxu0 0
    %657 = vmatpush1.bf16.xpose.msra.mxu0 0
    %658 = vmatprep.subr.bf16.mxu0 0
    %659 = vmatpush1.bf16.xpose.msra.mxu0 0
    %660 = vmatprep.subr.bf16.mxu0 0
    %661 = vmatpush1.bf16.xpose.msra.mxu0 %v644
    %662 = vmatprep.subr.bf16.mxu0 0
    %663 = vmatpush2.bf16.xpose.msra.mxu0 0
    %664 = vmatprep.subr.bf16.mxu0 0
    %665 = vmatpush2.bf16.xpose.msra.mxu0 0
    %666 = vmatprep.subr.bf16.mxu0 0
    %667 = vmatpush2.bf16.xpose.msra.mxu0 0
    %668 = vmatprep.subr.bf16.mxu0 0
    %669 = vmatpush2.bf16.xpose.msra.mxu0 0
    %670 = vmatprep.subr.bf16.mxu0 0
    %671 = vmatpush2.bf16.xpose.msra.mxu0 0
    %672 = vmatprep.subr.bf16.mxu0 0
    %673 = vmatpush2.bf16.xpose.msra.mxu0 0
    %674 = vmatprep.subr.bf16.mxu0 0
    %675 = vmatpush2.bf16.xpose.msra.mxu0 0
    %676 = vmatprep.subr.bf16.mxu0 0
    %677 = vmatpush2.bf16.xpose.msra.mxu0 0
    %678 = vmatprep.mubr.bf16.mxu0 0
    %679 = vmatmul.mubr.bf16.gmra.mxu0 %v641
    %v680 = vpop.f32.mrf.mxu0
    %v681 = vadd.f32 0.0, %v680
    %v682 = vpop.f32.mrf.mxu0
    %v683 = vpop.f32.mrf.mxu0
    %v684 = vpop.f32.mrf.mxu0
    %685 = vdwg.mxu0
    %v686 = vsel %vm131, %v630, -inf
    %687 = vmax.xlane.f32.xlu0 %v686
    %v688 = vpop.xlane.xlu0 %687
    %v689 = vsel %vm131, %v681, -inf
    %690 = vmax.xlane.f32.xlu0 %v689
    %v691 = vpop.xlane.xlu0 %690
    %v692 = vsub.f32 %v630, %v688
    %v693 = vsub.f32 %v681, %v691
    %v694 = vmul.f32 %v692, 1.442695
    %v695 = vpow.pop %v694
    %v696 = vmul.f32 %v693, 1.442695
    %v697 = vpow.pop %v696
    %v698 = vsel %vm131, %v695, 0.0
    %699 = vadd.xlane.f32.xlu0 %v698
    %v700 = vpop.xlane.xlu0 %699
    %v701 = vsel %vm131, %v697, 0.0
    %702 = vadd.xlane.f32.xlu0 %v701
    %v703 = vpop.xlane.xlu0 %702
    %v704 = vrcp.pop %v700
    %v705 = vrcp.pop %v703
    %v706 = vmul.f32 %v695, %v704
    %v707 = vmul.f32 %v697, %v705
    %v708 = vpack.c.bf16 %v706, %v706
    %v709 = vpack.c.bf16 %v707, %v707
    %710 = vrot.lane.b32.xlu0 %v274, 56
    %v711 = vpop.permute.xlu0 %710
    %v714 = vsel %vm131, %v708, 0
    %716 = vmatprep.subr.bf16.mxu0 0
    %717 = vmatpush1.bf16.msra.mxu0 0
    %718 = vmatprep.subr.bf16.mxu0 0
    %719 = vmatpush1.bf16.msra.mxu0 0
    %720 = vmatprep.subr.bf16.mxu0 0
    %721 = vmatpush1.bf16.msra.mxu0 0
    %722 = vmatprep.subr.bf16.mxu0 0
    %723 = vmatpush1.bf16.msra.mxu0 0
    %724 = vmatprep.subr.bf16.mxu0 0
    %725 = vmatpush1.bf16.msra.mxu0 0
    %726 = vmatprep.subr.bf16.mxu0 0
    %727 = vmatpush1.bf16.msra.mxu0 0
    %728 = vmatprep.subr.bf16.mxu0 0
    %729 = vmatpush1.bf16.msra.mxu0 0
    %730 = vmatprep.subr.bf16.mxu0 0
    %731 = vmatpush1.bf16.msra.mxu0 %v711
    %732 = vmatprep.subr.bf16.mxu0 0
    %733 = vmatpush2.bf16.msra.mxu0 0
    %734 = vmatprep.subr.bf16.mxu0 0
    %735 = vmatpush2.bf16.msra.mxu0 0
    %736 = vmatprep.subr.bf16.mxu0 0
    %737 = vmatpush2.bf16.msra.mxu0 0
    %738 = vmatprep.subr.bf16.mxu0 0
    %739 = vmatpush2.bf16.msra.mxu0 0
    %740 = vmatprep.subr.bf16.mxu0 0
    %741 = vmatpush2.bf16.msra.mxu0 0
    %742 = vmatprep.subr.bf16.mxu0 0
    %743 = vmatpush2.bf16.msra.mxu0 0
    %744 = vmatprep.subr.bf16.mxu0 0
    %745 = vmatpush2.bf16.msra.mxu0 0
    %746 = vmatprep.subr.bf16.mxu0 0
    %747 = vmatpush2.bf16.msra.mxu0 0
    %748 = vmatprep.mubr.bf16.mxu0 0
    %749 = vmatmul.mubr.bf16.gmra.mxu0 %v714
    %v750 = vpop.f32.mrf.mxu0
    %v751 = vadd.f32 0.0, %v750
    %v752 = vpop.f32.mrf.mxu0
    %v753 = vpop.f32.mrf.mxu0
    %v754 = vpop.f32.mrf.mxu0
    %755 = vdwg.mxu0
    %756 = vrot.lane.b32.xlu0 %v275, 56
    %v757 = vpop.permute.xlu0 %756
    %v760 = vsel %vm131, %v709, 0
    %762 = vmatprep.subr.bf16.mxu0 0
    %763 = vmatpush1.bf16.msra.mxu0 0
    %764 = vmatprep.subr.bf16.mxu0 0
    %765 = vmatpush1.bf16.msra.mxu0 0
    %766 = vmatprep.subr.bf16.mxu0 0
    %767 = vmatpush1.bf16.msra.mxu0 0
    %768 = vmatprep.subr.bf16.mxu0 0
    %769 = vmatpush1.bf16.msra.mxu0 0
    %770 = vmatprep.subr.bf16.mxu0 0
    %771 = vmatpush1.bf16.msra.mxu0 0
    %772 = vmatprep.subr.bf16.mxu0 0
    %773 = vmatpush1.bf16.msra.mxu0 0
    %774 = vmatprep.subr.bf16.mxu0 0
    %775 = vmatpush1.bf16.msra.mxu0 0
    %776 = vmatprep.subr.bf16.mxu0 0
    %777 = vmatpush1.bf16.msra.mxu0 %v757
    %778 = vmatprep.subr.bf16.mxu0 0
    %779 = vmatpush2.bf16.msra.mxu0 0
    %780 = vmatprep.subr.bf16.mxu0 0
    %781 = vmatpush2.bf16.msra.mxu0 0
    %782 = vmatprep.subr.bf16.mxu0 0
    %783 = vmatpush2.bf16.msra.mxu0 0
    %784 = vmatprep.subr.bf16.mxu0 0
    %785 = vmatpush2.bf16.msra.mxu0 0
    %786 = vmatprep.subr.bf16.mxu0 0
    %787 = vmatpush2.bf16.msra.mxu0 0
    %788 = vmatprep.subr.bf16.mxu0 0
    %789 = vmatpush2.bf16.msra.mxu0 0
    %790 = vmatprep.subr.bf16.mxu0 0
    %791 = vmatpush2.bf16.msra.mxu0 0
    %792 = vmatprep.subr.bf16.mxu0 0
    %793 = vmatpush2.bf16.msra.mxu0 0
    %794 = vmatprep.mubr.bf16.mxu0 0
    %795 = vmatmul.mubr.bf16.gmra.mxu0 %v760
    %v796 = vpop.f32.mrf.mxu0
    %v797 = vadd.f32 0.0, %v796
    %v798 = vpop.f32.mrf.mxu0
    %v799 = vpop.f32.mrf.mxu0
    %v800 = vpop.f32.mrf.mxu0
    %801 = vdwg.mxu0
    %802 = vrot.lane.b32.xlu0 %v367, 112
    %v803 = vpop.permute.xlu0 %802
    %804 = vrot.lane.b32.xlu0 %v274, 80
    %v805 = vpop.permute.xlu0 %804
    %v807 = vsel %vm372, %v803, 0
    %v810 = vsel %vm372, %v805, 0
    %812 = vmatprep.subr.bf16.mxu0 0
    %813 = vmatpush1.bf16.xpose.msra.mxu0 0
    %814 = vmatprep.subr.bf16.mxu0 0
    %815 = vmatpush1.bf16.xpose.msra.mxu0 0
    %816 = vmatprep.subr.bf16.mxu0 0
    %817 = vmatpush1.bf16.xpose.msra.mxu0 0
    %818 = vmatprep.subr.bf16.mxu0 0
    %819 = vmatpush1.bf16.xpose.msra.mxu0 0
    %820 = vmatprep.subr.bf16.mxu0 0
    %821 = vmatpush1.bf16.xpose.msra.mxu0 0
    %822 = vmatprep.subr.bf16.mxu0 0
    %823 = vmatpush1.bf16.xpose.msra.mxu0 0
    %824 = vmatprep.subr.bf16.mxu0 0
    %825 = vmatpush1.bf16.xpose.msra.mxu0 0
    %826 = vmatprep.subr.bf16.mxu0 0
    %827 = vmatpush1.bf16.xpose.msra.mxu0 %v810
    %828 = vmatprep.subr.bf16.mxu0 0
    %829 = vmatpush2.bf16.xpose.msra.mxu0 0
    %830 = vmatprep.subr.bf16.mxu0 0
    %831 = vmatpush2.bf16.xpose.msra.mxu0 0
    %832 = vmatprep.subr.bf16.mxu0 0
    %833 = vmatpush2.bf16.xpose.msra.mxu0 0
    %834 = vmatprep.subr.bf16.mxu0 0
    %835 = vmatpush2.bf16.xpose.msra.mxu0 0
    %836 = vmatprep.subr.bf16.mxu0 0
    %837 = vmatpush2.bf16.xpose.msra.mxu0 0
    %838 = vmatprep.subr.bf16.mxu0 0
    %839 = vmatpush2.bf16.xpose.msra.mxu0 0
    %840 = vmatprep.subr.bf16.mxu0 0
    %841 = vmatpush2.bf16.xpose.msra.mxu0 0
    %842 = vmatprep.subr.bf16.mxu0 0
    %843 = vmatpush2.bf16.xpose.msra.mxu0 0
    %844 = vmatprep.mubr.bf16.mxu0 0
    %845 = vmatmul.mubr.bf16.gmra.mxu0 %v807
    %v846 = vpop.f32.mrf.mxu0
    %v847 = vadd.f32 0.0, %v846
    %v848 = vpop.f32.mrf.mxu0
    %v849 = vpop.f32.mrf.mxu0
    %v850 = vpop.f32.mrf.mxu0
    %851 = vdwg.mxu0
    %852 = vrot.lane.b32.xlu0 %v368, 112
    %v853 = vpop.permute.xlu0 %852
    %854 = vrot.lane.b32.xlu0 %v275, 80
    %v855 = vpop.permute.xlu0 %854
    %v857 = vsel %vm372, %v853, 0
    %v860 = vsel %vm372, %v855, 0
    %862 = vmatprep.subr.bf16.mxu0 0
    %863 = vmatpush1.bf16.xpose.msra.mxu0 0
    %864 = vmatprep.subr.bf16.mxu0 0
    %865 = vmatpush1.bf16.xpose.msra.mxu0 0
    %866 = vmatprep.subr.bf16.mxu0 0
    %867 = vmatpush1.bf16.xpose.msra.mxu0 0
    %868 = vmatprep.subr.bf16.mxu0 0
    %869 = vmatpush1.bf16.xpose.msra.mxu0 0
    %870 = vmatprep.subr.bf16.mxu0 0
    %871 = vmatpush1.bf16.xpose.msra.mxu0 0
    %872 = vmatprep.subr.bf16.mxu0 0
    %873 = vmatpush1.bf16.xpose.msra.mxu0 0
    %874 = vmatprep.subr.bf16.mxu0 0
    %875 = vmatpush1.bf16.xpose.msra.mxu0 0
    %876 = vmatprep.subr.bf16.mxu0 0
    %877 = vmatpush1.bf16.xpose.msra.mxu0 %v860
    %878 = vmatprep.subr.bf16.mxu0 0
    %879 = vmatpush2.bf16.xpose.msra.mxu0 0
    %880 = vmatprep.subr.bf16.mxu0 0
    %881 = vmatpush2.bf16.xpose.msra.mxu0 0
    %882 = vmatprep.subr.bf16.mxu0 0
    %883 = vmatpush2.bf16.xpose.msra.mxu0 0
    %884 = vmatprep.subr.bf16.mxu0 0
    %885 = vmatpush2.bf16.xpose.msra.mxu0 0
    %886 = vmatprep.subr.bf16.mxu0 0
    %887 = vmatpush2.bf16.xpose.msra.mxu0 0
    %888 = vmatprep.subr.bf16.mxu0 0
    %889 = vmatpush2.bf16.xpose.msra.mxu0 0
    %890 = vmatprep.subr.bf16.mxu0 0
    %891 = vmatpush2.bf16.xpose.msra.mxu0 0
    %892 = vmatprep.subr.bf16.mxu0 0
    %893 = vmatpush2.bf16.xpose.msra.mxu0 0
    %894 = vmatprep.mubr.bf16.mxu0 0
    %895 = vmatmul.mubr.bf16.gmra.mxu0 %v857
    %v896 = vpop.f32.mrf.mxu0
    %v897 = vadd.f32 0.0, %v896
    %v898 = vpop.f32.mrf.mxu0
    %v899 = vpop.f32.mrf.mxu0
    %v900 = vpop.f32.mrf.mxu0
    %901 = vdwg.mxu0
    %v902 = vsel %vm131, %v847, -inf
    %903 = vmax.xlane.f32.xlu0 %v902
    %v904 = vpop.xlane.xlu0 %903
    %v905 = vsel %vm131, %v897, -inf
    %906 = vmax.xlane.f32.xlu0 %v905
    %v907 = vpop.xlane.xlu0 %906
    %v908 = vsub.f32 %v847, %v904
    %v909 = vsub.f32 %v897, %v907
    %v910 = vmul.f32 %v908, 1.442695
    %v911 = vpow.pop %v910
    %v912 = vmul.f32 %v909, 1.442695
    %v913 = vpow.pop %v912
    %v914 = vsel %vm131, %v911, 0.0
    %915 = vadd.xlane.f32.xlu0 %v914
    %v916 = vpop.xlane.xlu0 %915
    %v917 = vsel %vm131, %v913, 0.0
    %918 = vadd.xlane.f32.xlu0 %v917
    %v919 = vpop.xlane.xlu0 %918
    %v920 = vrcp.pop %v916
    %v921 = vrcp.pop %v919
    %v922 = vmul.f32 %v911, %v920
    %v923 = vmul.f32 %v913, %v921
    %v924 = vpack.c.bf16 %v922, %v922
    %v925 = vpack.c.bf16 %v923, %v923
    %926 = vrot.lane.b32.xlu0 %v274, 48
    %v927 = vpop.permute.xlu0 %926
    %v930 = vsel %vm131, %v924, 0
    %932 = vmatprep.subr.bf16.mxu0 0
    %933 = vmatpush1.bf16.msra.mxu0 0
    %934 = vmatprep.subr.bf16.mxu0 0
    %935 = vmatpush1.bf16.msra.mxu0 0
    %936 = vmatprep.subr.bf16.mxu0 0
    %937 = vmatpush1.bf16.msra.mxu0 0
    %938 = vmatprep.subr.bf16.mxu0 0
    %939 = vmatpush1.bf16.msra.mxu0 0
    %940 = vmatprep.subr.bf16.mxu0 0
    %941 = vmatpush1.bf16.msra.mxu0 0
    %942 = vmatprep.subr.bf16.mxu0 0
    %943 = vmatpush1.bf16.msra.mxu0 0
    %944 = vmatprep.subr.bf16.mxu0 0
    %945 = vmatpush1.bf16.msra.mxu0 0
    %946 = vmatprep.subr.bf16.mxu0 0
    %947 = vmatpush1.bf16.msra.mxu0 %v927
    %948 = vmatprep.subr.bf16.mxu0 0
    %949 = vmatpush2.bf16.msra.mxu0 0
    %950 = vmatprep.subr.bf16.mxu0 0
    %951 = vmatpush2.bf16.msra.mxu0 0
    %952 = vmatprep.subr.bf16.mxu0 0
    %953 = vmatpush2.bf16.msra.mxu0 0
    %954 = vmatprep.subr.bf16.mxu0 0
    %955 = vmatpush2.bf16.msra.mxu0 0
    %956 = vmatprep.subr.bf16.mxu0 0
    %957 = vmatpush2.bf16.msra.mxu0 0
    %958 = vmatprep.subr.bf16.mxu0 0
    %959 = vmatpush2.bf16.msra.mxu0 0
    %960 = vmatprep.subr.bf16.mxu0 0
    %961 = vmatpush2.bf16.msra.mxu0 0
    %962 = vmatprep.subr.bf16.mxu0 0
    %963 = vmatpush2.bf16.msra.mxu0 0
    %964 = vmatprep.mubr.bf16.mxu0 0
    %965 = vmatmul.mubr.bf16.gmra.mxu0 %v930
    %v966 = vpop.f32.mrf.mxu0
    %v967 = vadd.f32 0.0, %v966
    %v968 = vpop.f32.mrf.mxu0
    %v969 = vpop.f32.mrf.mxu0
    %v970 = vpop.f32.mrf.mxu0
    %971 = vdwg.mxu0
    %972 = vrot.lane.b32.xlu0 %v275, 48
    %v973 = vpop.permute.xlu0 %972
    %v976 = vsel %vm131, %v925, 0
    %978 = vmatprep.subr.bf16.mxu0 0
    %979 = vmatpush1.bf16.msra.mxu0 0
    %980 = vmatprep.subr.bf16.mxu0 0
    %981 = vmatpush1.bf16.msra.mxu0 0
    %982 = vmatprep.subr.bf16.mxu0 0
    %983 = vmatpush1.bf16.msra.mxu0 0
    %984 = vmatprep.subr.bf16.mxu0 0
    %985 = vmatpush1.bf16.msra.mxu0 0
    %986 = vmatprep.subr.bf16.mxu0 0
    %987 = vmatpush1.bf16.msra.mxu0 0
    %988 = vmatprep.subr.bf16.mxu0 0
    %989 = vmatpush1.bf16.msra.mxu0 0
    %990 = vmatprep.subr.bf16.mxu0 0
    %991 = vmatpush1.bf16.msra.mxu0 0
    %992 = vmatprep.subr.bf16.mxu0 0
    %993 = vmatpush1.bf16.msra.mxu0 %v973
    %994 = vmatprep.subr.bf16.mxu0 0
    %995 = vmatpush2.bf16.msra.mxu0 0
    %996 = vmatprep.subr.bf16.mxu0 0
    %997 = vmatpush2.bf16.msra.mxu0 0
    %998 = vmatprep.subr.bf16.mxu0 0
    %999 = vmatpush2.bf16.msra.mxu0 0
    %1000 = vmatprep.subr.bf16.mxu0 0
    %1001 = vmatpush2.bf16.msra.mxu0 0
    %1002 = vmatprep.subr.bf16.mxu0 0
    %1003 = vmatpush2.bf16.msra.mxu0 0
    %1004 = vmatprep.subr.bf16.mxu0 0
    %1005 = vmatpush2.bf16.msra.mxu0 0
    %1006 = vmatprep.subr.bf16.mxu0 0
    %1007 = vmatpush2.bf16.msra.mxu0 0
    %1008 = vmatprep.subr.bf16.mxu0 0
    %1009 = vmatpush2.bf16.msra.mxu0 0
    %1010 = vmatprep.mubr.bf16.mxu0 0
    %1011 = vmatmul.mubr.bf16.gmra.mxu0 %v976
    %v1012 = vpop.f32.mrf.mxu0
    %v1013 = vadd.f32 0.0, %v1012
    %v1014 = vpop.f32.mrf.mxu0
    %v1015 = vpop.f32.mrf.mxu0
    %v1016 = vpop.f32.mrf.mxu0
    %1017 = vdwg.mxu0
    %1018 = vrot.lane.b32.xlu0 %v367, 104
    %v1019 = vpop.permute.xlu0 %1018
    %1020 = vrot.lane.b32.xlu0 %v274, 72
    %v1021 = vpop.permute.xlu0 %1020
    %v1023 = vsel %vm372, %v1019, 0
    %v1026 = vsel %vm372, %v1021, 0
    %1028 = vmatprep.subr.bf16.mxu0 0
    %1029 = vmatpush1.bf16.xpose.msra.mxu0 0
    %1030 = vmatprep.subr.bf16.mxu0 0
    %1031 = vmatpush1.bf16.xpose.msra.mxu0 0
    %1032 = vmatprep.subr.bf16.mxu0 0
    %1033 = vmatpush1.bf16.xpose.msra.mxu0 0
    %1034 = vmatprep.subr.bf16.mxu0 0
    %1035 = vmatpush1.bf16.xpose.msra.mxu0 0
    %1036 = vmatprep.subr.bf16.mxu0 0
    %1037 = vmatpush1.bf16.xpose.msra.mxu0 0
    %1038 = vmatprep.subr.bf16.mxu0 0
    %1039 = vmatpush1.bf16.xpose.msra.mxu0 0
    %1040 = vmatprep.subr.bf16.mxu0 0
    %1041 = vmatpush1.bf16.xpose.msra.mxu0 0
    %1042 = vmatprep.subr.bf16.mxu0 0
    %1043 = vmatpush1.bf16.xpose.msra.mxu0 %v1026
    %1044 = vmatprep.subr.bf16.mxu0 0
    %1045 = vmatpush2.bf16.xpose.msra.mxu0 0
    %1046 = vmatprep.subr.bf16.mxu0 0
    %1047 = vmatpush2.bf16.xpose.msra.mxu0 0
    %1048 = vmatprep.subr.bf16.mxu0 0
    %1049 = vmatpush2.bf16.xpose.msra.mxu0 0
    %1050 = vmatprep.subr.bf16.mxu0 0
    %1051 = vmatpush2.bf16.xpose.msra.mxu0 0
    %1052 = vmatprep.subr.bf16.mxu0 0
    %1053 = vmatpush2.bf16.xpose.msra.mxu0 0
    %1054 = vmatprep.subr.bf16.mxu0 0
    %1055 = vmatpush2.bf16.xpose.msra.mxu0 0
    %1056 = vmatprep.subr.bf16.mxu0 0
    %1057 = vmatpush2.bf16.xpose.msra.mxu0 0
    %1058 = vmatprep.subr.bf16.mxu0 0
    %1059 = vmatpush2.bf16.xpose.msra.mxu0 0
    %1060 = vmatprep.mubr.bf16.mxu0 0
    %1061 = vmatmul.mubr.bf16.gmra.mxu0 %v1023
    %v1062 = vpop.f32.mrf.mxu0
    %v1063 = vadd.f32 0.0, %v1062
    %v1064 = vpop.f32.mrf.mxu0
    %v1065 = vpop.f32.mrf.mxu0
    %v1066 = vpop.f32.mrf.mxu0
    %1067 = vdwg.mxu0
    %1068 = vrot.lane.b32.xlu0 %v368, 104
    %v1069 = vpop.permute.xlu0 %1068
    %1070 = vrot.lane.b32.xlu0 %v275, 72
    %v1071 = vpop.permute.xlu0 %1070
    %v1073 = vsel %vm372, %v1069, 0
    %v1076 = vsel %vm372, %v1071, 0
    %1078 = vmatprep.subr.bf16.mxu0 0
    %1079 = vmatpush1.bf16.xpose.msra.mxu0 0
    %1080 = vmatprep.subr.bf16.mxu0 0
    %1081 = vmatpush1.bf16.xpose.msra.mxu0 0
    %1082 = vmatprep.subr.bf16.mxu0 0
    %1083 = vmatpush1.bf16.xpose.msra.mxu0 0
    %1084 = vmatprep.subr.bf16.mxu0 0
    %1085 = vmatpush1.bf16.xpose.msra.mxu0 0
    %1086 = vmatprep.subr.bf16.mxu0 0
    %1087 = vmatpush1.bf16.xpose.msra.mxu0 0
    %1088 = vmatprep.subr.bf16.mxu0 0
    %1089 = vmatpush1.bf16.xpose.msra.mxu0 0
    %1090 = vmatprep.subr.bf16.mxu0 0
    %1091 = vmatpush1.bf16.xpose.msra.mxu0 0
    %1092 = vmatprep.subr.bf16.mxu0 0
    %1093 = vmatpush1.bf16.xpose.msra.mxu0 %v1076
    %1094 = vmatprep.subr.bf16.mxu0 0
    %1095 = vmatpush2.bf16.xpose.msra.mxu0 0
    %1096 = vmatprep.subr.bf16.mxu0 0
    %1097 = vmatpush2.bf16.xpose.msra.mxu0 0
    %1098 = vmatprep.subr.bf16.mxu0 0
    %1099 = vmatpush2.bf16.xpose.msra.mxu0 0
    %1100 = vmatprep.subr.bf16.mxu0 0
    %1101 = vmatpush2.bf16.xpose.msra.mxu0 0
    %1102 = vmatprep.subr.bf16.mxu0 0
    %1103 = vmatpush2.bf16.xpose.msra.mxu0 0
    %1104 = vmatprep.subr.bf16.mxu0 0
    %1105 = vmatpush2.bf16.xpose.msra.mxu0 0
    %1106 = vmatprep.subr.bf16.mxu0 0
    %1107 = vmatpush2.bf16.xpose.msra.mxu0 0
    %1108 = vmatprep.subr.bf16.mxu0 0
    %1109 = vmatpush2.bf16.xpose.msra.mxu0 0
    %1110 = vmatprep.mubr.bf16.mxu0 0
    %1111 = vmatmul.mubr.bf16.gmra.mxu0 %v1073
    %v1112 = vpop.f32.mrf.mxu0
    %v1113 = vadd.f32 0.0, %v1112
    %v1114 = vpop.f32.mrf.mxu0
    %v1115 = vpop.f32.mrf.mxu0
    %v1116 = vpop.f32.mrf.mxu0
    %1117 = vdwg.mxu0
    %v1118 = vsel %vm131, %v1063, -inf
    %1119 = vmax.xlane.f32.xlu0 %v1118
    %v1120 = vpop.xlane.xlu0 %1119
    %v1121 = vsel %vm131, %v1113, -inf
    %1122 = vmax.xlane.f32.xlu0 %v1121
    %v1123 = vpop.xlane.xlu0 %1122
    %v1124 = vsub.f32 %v1063, %v1120
    %v1125 = vsub.f32 %v1113, %v1123
    %v1126 = vmul.f32 %v1124, 1.442695
    %v1127 = vpow.pop %v1126
    %v1128 = vmul.f32 %v1125, 1.442695
    %v1129 = vpow.pop %v1128
    %v1130 = vsel %vm131, %v1127, 0.0
    %1131 = vadd.xlane.f32.xlu0 %v1130
    %v1132 = vpop.xlane.xlu0 %1131
    %v1133 = vsel %vm131, %v1129, 0.0
    %1134 = vadd.xlane.f32.xlu0 %v1133
    %v1135 = vpop.xlane.xlu0 %1134
    %v1136 = vrcp.pop %v1132
    %v1137 = vrcp.pop %v1135
    %v1138 = vmul.f32 %v1127, %v1136
    %v1139 = vmul.f32 %v1129, %v1137
    %v1140 = vpack.c.bf16 %v1138, %v1138
    %v1141 = vpack.c.bf16 %v1139, %v1139
    %1142 = vrot.lane.b32.xlu0 %v274, 40
    %v1143 = vpop.permute.xlu0 %1142
    %v1146 = vsel %vm131, %v1140, 0
    %1148 = vmatprep.subr.bf16.mxu0 0
    %1149 = vmatpush1.bf16.msra.mxu0 0
    %1150 = vmatprep.subr.bf16.mxu0 0
    %1151 = vmatpush1.bf16.msra.mxu0 0
    %1152 = vmatprep.subr.bf16.mxu0 0
    %1153 = vmatpush1.bf16.msra.mxu0 0
    %1154 = vmatprep.subr.bf16.mxu0 0
    %1155 = vmatpush1.bf16.msra.mxu0 0
    %1156 = vmatprep.subr.bf16.mxu0 0
    %1157 = vmatpush1.bf16.msra.mxu0 0
    %1158 = vmatprep.subr.bf16.mxu0 0
    %1159 = vmatpush1.bf16.msra.mxu0 0
    %1160 = vmatprep.subr.bf16.mxu0 0
    %1161 = vmatpush1.bf16.msra.mxu0 0
    %1162 = vmatprep.subr.bf16.mxu0 0
    %1163 = vmatpush1.bf16.msra.mxu0 %v1143
    %1164 = vmatprep.subr.bf16.mxu0 0
    %1165 = vmatpush2.bf16.msra.mxu0 0
    %1166 = vmatprep.subr.bf16.mxu0 0
    %1167 = vmatpush2.bf16.msra.mxu0 0
    %1168 = vmatprep.subr.bf16.mxu0 0
    %1169 = vmatpush2.bf16.msra.mxu0 0
    %1170 = vmatprep.subr.bf16.mxu0 0
    %1171 = vmatpush2.bf16.msra.mxu0 0
    %1172 = vmatprep.subr.bf16.mxu0 0
    %1173 = vmatpush2.bf16.msra.mxu0 0
    %1174 = vmatprep.subr.bf16.mxu0 0
    %1175 = vmatpush2.bf16.msra.mxu0 0
    %1176 = vmatprep.subr.bf16.mxu0 0
    %1177 = vmatpush2.bf16.msra.mxu0 0
    %1178 = vmatprep.subr.bf16.mxu0 0
    %1179 = vmatpush2.bf16.msra.mxu0 0
    %1180 = vmatprep.mubr.bf16.mxu0 0
    %1181 = vmatmul.mubr.bf16.gmra.mxu0 %v1146
    %v1182 = vpop.f32.mrf.mxu0
    %v1183 = vadd.f32 0.0, %v1182
    %v1184 = vpop.f32.mrf.mxu0
    %v1185 = vpop.f32.mrf.mxu0
    %v1186 = vpop.f32.mrf.mxu0
    %1187 = vdwg.mxu0
    %1188 = vrot.lane.b32.xlu0 %v275, 40
    %v1189 = vpop.permute.xlu0 %1188
    %v1192 = vsel %vm131, %v1141, 0
    %1194 = vmatprep.subr.bf16.mxu0 0
    %1195 = vmatpush1.bf16.msra.mxu0 0
    %1196 = vmatprep.subr.bf16.mxu0 0
    %1197 = vmatpush1.bf16.msra.mxu0 0
    %1198 = vmatprep.subr.bf16.mxu0 0
    %1199 = vmatpush1.bf16.msra.mxu0 0
    %1200 = vmatprep.subr.bf16.mxu0 0
    %1201 = vmatpush1.bf16.msra.mxu0 0
    %1202 = vmatprep.subr.bf16.mxu0 0
    %1203 = vmatpush1.bf16.msra.mxu0 0
    %1204 = vmatprep.subr.bf16.mxu0 0
    %1205 = vmatpush1.bf16.msra.mxu0 0
    %1206 = vmatprep.subr.bf16.mxu0 0
    %1207 = vmatpush1.bf16.msra.mxu0 0
    %1208 = vmatprep.subr.bf16.mxu0 0
    %1209 = vmatpush1.bf16.msra.mxu0 %v1189
    %1210 = vmatprep.subr.bf16.mxu0 0
    %1211 = vmatpush2.bf16.msra.mxu0 0
    %1212 = vmatprep.subr.bf16.mxu0 0
    %1213 = vmatpush2.bf16.msra.mxu0 0
    %1214 = vmatprep.subr.bf16.mxu0 0
    %1215 = vmatpush2.bf16.msra.mxu0 0
    %1216 = vmatprep.subr.bf16.mxu0 0
    %1217 = vmatpush2.bf16.msra.mxu0 0
    %1218 = vmatprep.subr.bf16.mxu0 0
    %1219 = vmatpush2.bf16.msra.mxu0 0
    %1220 = vmatprep.subr.bf16.mxu0 0
    %1221 = vmatpush2.bf16.msra.mxu0 0
    %1222 = vmatprep.subr.bf16.mxu0 0
    %1223 = vmatpush2.bf16.msra.mxu0 0
    %1224 = vmatprep.subr.bf16.mxu0 0
    %1225 = vmatpush2.bf16.msra.mxu0 0
    %1226 = vmatprep.mubr.bf16.mxu0 0
    %1227 = vmatmul.mubr.bf16.gmra.mxu0 %v1192
    %v1228 = vpop.f32.mrf.mxu0
    %v1229 = vadd.f32 0.0, %v1228
    %v1230 = vpop.f32.mrf.mxu0
    %v1231 = vpop.f32.mrf.mxu0
    %v1232 = vpop.f32.mrf.mxu0
    %1233 = vdwg.mxu0
    %1236 = vrot.lane.b32.xlu0 %v751, 8
    %v1237 = vpop.permute.xlu0 %1236
    %1238 = vrot.lane.b32.xlu0 %v797, 8
    %v1239 = vpop.permute.xlu0 %1238
    %1244 = vrot.lane.b32.xlu0 %v967, 16
    %v1245 = vpop.permute.xlu0 %1244
    %1246 = vrot.lane.b32.xlu0 %v1013, 16
    %v1247 = vpop.permute.xlu0 %1246
    %1252 = vrot.lane.b32.xlu0 %v1183, 24
    %v1253 = vpop.permute.xlu0 %1252
    %1254 = vrot.lane.b32.xlu0 %v1229, 24
    %v1255 = vpop.permute.xlu0 %1254
    %v1258 = vsel %vm372, %v533, %v1237
    %v1259 = vsel %vm372, %v579, %v1239
    %v1260 = vsel %vm131, %v1258, %v1245
    %v1261 = vsel %vm131, %v1259, %v1247
    %vm1262 = vcmask 195584
    %v1263 = vsel %vm1262, %v1260, %v1253
    %v1264 = vsel %vm1262, %v1261, %v1255
    %v1265 = vpack.c.bf16 %v1264, %v1263
    %v1266 = vld [vmem:[%s6] sm:$0xf]
    %v1267 = vld [vmem:[%s6 + $0x4] sm:$0xf]
    %v1268 = vld [vmem:[%s6 + $0x8] sm:$0xf]
    %v1269 = vld [vmem:[%s6 + $0xc] sm:$0xf]
    %s1270 = scalar_lea.vmem [#allocation8], 4
    %v1271 = vld [vmem:[%s1270] sm:$0xf]
    %v1272 = vpack.c.bf16 %v126, %v125
    %v1273 = vpack.c.bf16 %v128, %v127
    %s1274 = scalar_lea.vmem %s5, 8
    %v1275 = vld [vmem:[%s1274] sm:$0xff]
    %1277 = vset.pattern.permute.xlu0 0
    %1278 = vperm.xlu0 %1277, %v1275
    %v1279 = vpop.permute.xlu0 %1278
    %v1282 = vsel %vm131, %v1271, 0
    %1284 = vmatprep.subr.bf16.mxu0 0
    %1285 = vmatpush1.bf16.msra.mxu0 0
    %1286 = vmatprep.subr.bf16.mxu0 0
    %1287 = vmatpush1.bf16.msra.mxu0 0
    %1288 = vmatprep.subr.bf16.mxu0 0
    %1289 = vmatpush1.bf16.msra.mxu0 0
    %1290 = vmatprep.subr.bf16.mxu0 0
    %1291 = vmatpush1.bf16.msra.mxu0 0
    %1292 = vmatprep.subr.bf16.mxu0 0
    %1293 = vmatpush1.bf16.msra.mxu0 0
    %1294 = vmatprep.subr.bf16.mxu0 0
    %1295 = vmatpush1.bf16.msra.mxu0 0
    %1296 = vmatprep.subr.bf16.mxu0 0
    %1297 = vmatpush1.bf16.msra.mxu0 0
    %1298 = vmatprep.subr.bf16.mxu0 0
    %1299 = vmatpush1.bf16.msra.mxu0 %v1272
    %1300 = vmatprep.subr.bf16.mxu0 0
    %1301 = vmatpush2.bf16.msra.mxu0 0
    %1302 = vmatprep.subr.bf16.mxu0 0
    %1303 = vmatpush2.bf16.msra.mxu0 0
    %1304 = vmatprep.subr.bf16.mxu0 0
    %1305 = vmatpush2.bf16.msra.mxu0 0
    %1306 = vmatprep.subr.bf16.mxu0 0
    %1307 = vmatpush2.bf16.msra.mxu0 0
    %1308 = vmatprep.subr.bf16.mxu0 0
    %1309 = vmatpush2.bf16.msra.mxu0 0
    %1310 = vmatprep.subr.bf16.mxu0 0
    %1311 = vmatpush2.bf16.msra.mxu0 0
    %1312 = vmatprep.subr.bf16.mxu0 0
    %1313 = vmatpush2.bf16.msra.mxu0 0
    %1314 = vmatprep.subr.bf16.mxu0 0
    %1315 = vmatpush2.bf16.msra.mxu0 0
    %1316 = vmatprep.mubr.bf16.mxu0 0
    %1317 = vmatmul.mubr.bf16.gmra.mxu0 %v1282
    %v1318 = vpop.f32.mrf.mxu0
    %v1319 = vadd.f32 %v1279, %v1318
    %v1320 = vpop.f32.mrf.mxu0
    %v1321 = vpop.f32.mrf.mxu0
    %v1322 = vpop.f32.mrf.mxu0
    %1323 = vdwg.mxu0
    %1324 = vmatprep.subr.bf16.mxu0 0
    %1325 = vmatpush1.bf16.msra.mxu0 0
    %1326 = vmatprep.subr.bf16.mxu0 0
    %1327 = vmatpush1.bf16.msra.mxu0 0
    %1328 = vmatprep.subr.bf16.mxu0 0
    %1329 = vmatpush1.bf16.msra.mxu0 0
    %1330 = vmatprep.subr.bf16.mxu0 0
    %1331 = vmatpush1.bf16.msra.mxu0 0
    %1332 = vmatprep.subr.bf16.mxu0 0
    %1333 = vmatpush1.bf16.msra.mxu0 0
    %1334 = vmatprep.subr.bf16.mxu0 0
    %1335 = vmatpush1.bf16.msra.mxu0 0
    %1336 = vmatprep.subr.bf16.mxu0 0
    %1337 = vmatpush1.bf16.msra.mxu0 0
    %1338 = vmatprep.subr.bf16.mxu0 0
    %1339 = vmatpush1.bf16.msra.mxu0 %v1273
    %1340 = vmatprep.subr.bf16.mxu0 0
    %1341 = vmatpush2.bf16.msra.mxu0 0
    %1342 = vmatprep.subr.bf16.mxu0 0
    %1343 = vmatpush2.bf16.msra.mxu0 0
    %1344 = vmatprep.subr.bf16.mxu0 0
    %1345 = vmatpush2.bf16.msra.mxu0 0
    %1346 = vmatprep.subr.bf16.mxu0 0
    %1347 = vmatpush2.bf16.msra.mxu0 0
    %1348 = vmatprep.subr.bf16.mxu0 0
    %1349 = vmatpush2.bf16.msra.mxu0 0
    %1350 = vmatprep.subr.bf16.mxu0 0
    %1351 = vmatpush2.bf16.msra.mxu0 0
    %1352 = vmatprep.subr.bf16.mxu0 0
    %1353 = vmatpush2.bf16.msra.mxu0 0
    %1354 = vmatprep.subr.bf16.mxu0 0
    %1355 = vmatpush2.bf16.msra.mxu0 0
    %1356 = vmatprep.mubr.bf16.mxu0 0
    %1357 = vmatmul.mubr.bf16.gmra.mxu0 %v1282
    %v1358 = vpop.f32.mrf.mxu0
    %v1359 = vadd.f32 %v1279, %v1358
    %v1360 = vpop.f32.mrf.mxu0
    %v1361 = vpop.f32.mrf.mxu0
    %v1362 = vpop.f32.mrf.mxu0
    %1363 = vdwg.mxu0
    %v1364 = vpack.c.bf16 %v1359, %v1319
    %v1365 = vld [vmem:[#allocation10] sm:$0xf]
    %v1366 = vld [vmem:[#allocation10 + $0x4] sm:$0xf]
    %v1369 = vunpack.c.l.b16 %v1365
    %v1370 = vunpack.c.l.b16 %v1366
    %v1371 = vpack.c.b16 %v1370, %v1369
    %v1374 = vsel %vm131, %v1364, 0
    %1376 = vmatprep.subr.bf16.mxu0 0
    %1377 = vmatpush1.bf16.msra.mxu0 0
    %1378 = vmatprep.subr.bf16.mxu0 0
    %1379 = vmatpush1.bf16.msra.mxu0 0
    %1380 = vmatprep.subr.bf16.mxu0 0
    %1381 = vmatpush1.bf16.msra.mxu0 0
    %1382 = vmatprep.subr.bf16.mxu0 0
    %1383 = vmatpush1.bf16.msra.mxu0 0
    %1384 = vmatprep.subr.bf16.mxu0 0
    %1385 = vmatpush1.bf16.msra.mxu0 0
    %1386 = vmatprep.subr.bf16.mxu0 0
    %1387 = vmatpush1.bf16.msra.mxu0 0
    %1388 = vmatprep.subr.bf16.mxu0 0
    %1389 = vmatpush1.bf16.msra.mxu0 0
    %1390 = vmatprep.subr.bf16.mxu0 0
    %1391 = vmatpush1.bf16.msra.mxu0 %v1371
    %1392 = vmatprep.subr.bf16.mxu0 0
    %1393 = vmatpush2.bf16.msra.mxu0 0
    %1394 = vmatprep.subr.bf16.mxu0 0
    %1395 = vmatpush2.bf16.msra.mxu0 0
    %1396 = vmatprep.subr.bf16.mxu0 0
    %1397 = vmatpush2.bf16.msra.mxu0 0
    %1398 = vmatprep.subr.bf16.mxu0 0
    %1399 = vmatpush2.bf16.msra.mxu0 0
    %1400 = vmatprep.subr.bf16.mxu0 0
    %1401 = vmatpush2.bf16.msra.mxu0 0
    %1402 = vmatprep.subr.bf16.mxu0 0
    %1403 = vmatpush2.bf16.msra.mxu0 0
    %1404 = vmatprep.subr.bf16.mxu0 0
    %1405 = vmatpush2.bf16.msra.mxu0 0
    %1406 = vmatprep.subr.bf16.mxu0 0
    %1407 = vmatpush2.bf16.msra.mxu0 0
    %1408 = vmatprep.mubr.bf16.mxu0 0
    %1409 = vmatmul.mubr.bf16.gmra.mxu0 %v1374
    %v1410 = vpop.f32.mrf.mxu0
    %v1411 = vadd.f32 0.0, %v1410
    %v1412 = vpop.f32.mrf.mxu0
    %v1413 = vpop.f32.mrf.mxu0
    %v1414 = vadd.f32 0.0, %v1413
    %v1415 = vpop.f32.mrf.mxu0
    %1416 = vdwg.mxu0
    %v1421 = vunpack.c.l.b16 %v1266
    %v1422 = vunpack.c.l.b16 %v1267
    %v1423 = vunpack.c.l.b16 %v1268
    %v1424 = vunpack.c.l.b16 %v1269
    %v1425 = vpack.c.b16 %v1422, %v1421
    %v1426 = vpack.c.b16 %v1424, %v1423
    %vm1429 = vcmask 261120
    %v1431 = vsel %vm1429, %v1265, 0
    %1433 = vmatprep.subr.bf16.mxu0 0
    %1434 = vmatpush1.bf16.msra.mxu0 0
    %1435 = vmatprep.subr.bf16.mxu0 0
    %1436 = vmatpush1.bf16.msra.mxu0 0
    %1437 = vmatprep.subr.bf16.mxu0 0
    %1438 = vmatpush1.bf16.msra.mxu0 0
    %1439 = vmatprep.subr.bf16.mxu0 0
    %1440 = vmatpush1.bf16.msra.mxu0 0
    %1441 = vmatprep.subr.bf16.mxu0 0
    %1442 = vmatpush1.bf16.msra.mxu0 0
    %1443 = vmatprep.subr.bf16.mxu0 0
    %1444 = vmatpush1.bf16.msra.mxu0 0
    %1445 = vmatprep.subr.bf16.mxu0 0
    %1446 = vmatpush1.bf16.msra.mxu0 %v1426
    %1447 = vmatprep.subr.bf16.mxu0 0
    %1448 = vmatpush1.bf16.msra.mxu0 %v1425
    %1449 = vmatprep.subr.bf16.mxu0 0
    %1450 = vmatpush2.bf16.msra.mxu0 0
    %1451 = vmatprep.subr.bf16.mxu0 0
    %1452 = vmatpush2.bf16.msra.mxu0 0
    %1453 = vmatprep.subr.bf16.mxu0 0
    %1454 = vmatpush2.bf16.msra.mxu0 0
    %1455 = vmatprep.subr.bf16.mxu0 0
    %1456 = vmatpush2.bf16.msra.mxu0 0
    %1457 = vmatprep.subr.bf16.mxu0 0
    %1458 = vmatpush2.bf16.msra.mxu0 0
    %1459 = vmatprep.subr.bf16.mxu0 0
    %1460 = vmatpush2.bf16.msra.mxu0 0
    %1461 = vmatprep.subr.bf16.mxu0 0
    %1462 = vmatpush2.bf16.msra.mxu0 0
    %1463 = vmatprep.subr.bf16.mxu0 0
    %1464 = vmatpush2.bf16.msra.mxu0 0
    %1465 = vmatprep.mubr.bf16.mxu0 0
    %1466 = vmatmul.mubr.bf16.gmra.mxu0 %v1431
    %v1467 = vpop.f32.mrf.mxu0
    %v1468 = vadd.f32 %v1411, %v1467
    %v1469 = vpop.f32.mrf.mxu0
    %v1470 = vpop.f32.mrf.mxu0
    %v1471 = vadd.f32 %v1414, %v1470
    %v1472 = vpop.f32.mrf.mxu0
    %1473 = vdwg.mxu0
    %v1474 = vld [vmem:[#allocation11] sm:$0x1]
    %v1476 = vlaneseq
    %v1477 = vshrl.u32 %v1476, 7
    %v1478 = vsub.s32 0, %v1477
    %v1479 = vrot.slane %v1474, %v1478
    %v1481 = vadd.f32 %v1468, %v1479
    %v1482 = vadd.f32 %v1471, %v1479
    %v1483 = vld [vmem:[%s9] sm:$0x1]
    %v1484 = vld [vmem:[%s9 + $0x1] sm:$0x1]
    %v1485 = vsel %vm1429, %v1481, 0.0
    %1486 = vadd.xlane.f32.xlu0 %v1485
    %v1487 = vpop.xlane.xlu0 %1486
    %v1488 = vsel %vm1429, %v1482, 0.0
    %1489 = vadd.xlane.f32.xlu0 %v1488
    %v1490 = vpop.xlane.xlu0 %1489
    %v1491 = vrcp.pop 32.0
    %v1492 = vmul.f32 %v1487, %v1491
    %v1493 = vmul.f32 %v1490, %v1491
    %v1494 = vsub.f32 %v1481, %v1492
    %v1495 = vsub.f32 %v1482, %v1493
    %v1496 = vmul.f32 %v1494, %v1494
    %v1497 = vmul.f32 %v1495, %v1495
    %v1498 = vsel %vm1429, %v1496, 0.0
    %1499 = vadd.xlane.f32.xlu0 %v1498
    %v1500 = vpop.xlane.xlu0 %1499
    %v1501 = vsel %vm1429, %v1497, 0.0
    %1502 = vadd.xlane.f32.xlu0 %v1501
    %v1503 = vpop.xlane.xlu0 %1502
    %v1504 = vmul.f32 %v1500, %v1491
    %v1505 = vmul.f32 %v1503, %v1491
    %v1506 = vadd.f32 %v1504, 1e-06
    %v1507 = vadd.f32 %v1505, 1e-06
    %v1508 = vrsqrt.pop %v1506
    %v1509 = vrsqrt.pop %v1507
    %v1510 = vmul.f32 %v1494, %v1508
    %v1511 = vmul.f32 %v1495, %v1509
    %v1512 = vlaneseq
    %v1513 = vshrl.u32 %v1512, 7
    %v1514 = vsub.s32 0, %v1513
    %v1515 = vrot.slane %v1483, %v1514
    %v1516 = vmul.f32 %v1510, %v1515
    %v1517 = vmul.f32 %v1511, %v1515
    %v1518 = vlaneseq
    %v1519 = vshrl.u32 %v1518, 7
    %v1520 = vsub.s32 0, %v1519
    %v1521 = vrot.slane %v1484, %v1520
    %v1522 = vadd.f32 %v1516, %v1521
    %v1523 = vadd.f32 %v1517, %v1521
    %v1524 = vpack.c.bf16 %v1523, %v1522
    %v1525 = vld [vmem:[%s10] sm:$0xf]
    %v1526 = vld [vmem:[%s10 + $0x4] sm:$0xf]
    %v1527 = vld [vmem:[%s10 + $0x8] sm:$0xf]
    %v1528 = vld [vmem:[%s10 + $0xc] sm:$0xf]
    %v1529 = vld [vmem:[%s11] sm:$0x1]
    %v1531 = vlaneseq
    %v1532 = vshrl.u32 %v1531, 7
    %v1533 = vsub.s32 0, %v1532
    %v1534 = vrot.slane %v1529, %v1533
    %v1540 = vunpack.c.l.b16 %v1525
    %v1541 = vunpack.c.l.b16 %v1526
    %v1542 = vunpack.c.l.b16 %v1527
    %v1543 = vunpack.c.l.b16 %v1528
    %v1544 = vpack.c.b16 %v1541, %v1540
    %v1545 = vpack.c.b16 %v1543, %v1542
    %v1549 = vsel %vm1429, %v1524, 0
    %1551 = vmatprep.subr.bf16.mxu0 0
    %1552 = vmatpush1.bf16.msra.mxu0 0
    %1553 = vmatprep.subr.bf16.mxu0 0
    %1554 = vmatpush1.bf16.msra.mxu0 0
    %1555 = vmatprep.subr.bf16.mxu0 0
    %1556 = vmatpush1.bf16.msra.mxu0 0
    %1557 = vmatprep.subr.bf16.mxu0 0
    %1558 = vmatpush1.bf16.msra.mxu0 0
    %1559 = vmatprep.subr.bf16.mxu0 0
    %1560 = vmatpush1.bf16.msra.mxu0 0
    %1561 = vmatprep.subr.bf16.mxu0 0
    %1562 = vmatpush1.bf16.msra.mxu0 0
    %1563 = vmatprep.subr.bf16.mxu0 0
    %1564 = vmatpush1.bf16.msra.mxu0 %v1545
    %1565 = vmatprep.subr.bf16.mxu0 0
    %1566 = vmatpush1.bf16.msra.mxu0 %v1544
    %1567 = vmatprep.subr.bf16.mxu0 0
    %1568 = vmatpush2.bf16.msra.mxu0 0
    %1569 = vmatprep.subr.bf16.mxu0 0
    %1570 = vmatpush2.bf16.msra.mxu0 0
    %1571 = vmatprep.subr.bf16.mxu0 0
    %1572 = vmatpush2.bf16.msra.mxu0 0
    %1573 = vmatprep.subr.bf16.mxu0 0
    %1574 = vmatpush2.bf16.msra.mxu0 0
    %1575 = vmatprep.subr.bf16.mxu0 0
    %1576 = vmatpush2.bf16.msra.mxu0 0
    %1577 = vmatprep.subr.bf16.mxu0 0
    %1578 = vmatpush2.bf16.msra.mxu0 0
    %1579 = vmatprep.subr.bf16.mxu0 0
    %1580 = vmatpush2.bf16.msra.mxu0 0
    %1581 = vmatprep.subr.bf16.mxu0 0
    %1582 = vmatpush2.bf16.msra.mxu0 0
    %1583 = vmatprep.mubr.bf16.mxu0 0
    %1584 = vmatmul.mubr.bf16.gmra.mxu0 %v1549
    %v1585 = vpop.f32.mrf.mxu0
    %v1586 = vadd.f32 %v1534, %v1585
    %v1587 = vpop.f32.mrf.mxu0
    %v1588 = vpop.f32.mrf.mxu0
    %v1589 = vadd.f32 %v1534, %v1588
    %v1590 = vpop.f32.mrf.mxu0
    %1591 = vdwg.mxu0
    %v1592 = vmax.f32 %v1586, 0.0
    %v1593 = vmax.f32 %v1589, 0.0
    %v1594 = vpack.c.bf16 %v1593, %v1592
    %v1595 = vld [vmem:[%s12] sm:$0xf]
    %v1596 = vld [vmem:[%s12 + $0x4] sm:$0xf]
    %v1597 = vld [vmem:[%s12 + $0x8] sm:$0xf]
    %v1598 = vld [vmem:[%s12 + $0xc] sm:$0xf]
    %v1599 = vld [vmem:[%s12 + $0x10] sm:$0xf]
    %v1600 = vld [vmem:[%s12 + $0x14] sm:$0xf]
    %v1601 = vld [vmem:[%s12 + $0x18] sm:$0xf]
    %v1602 = vld [vmem:[%s12 + $0x1c] sm:$0xf]
    %v1603 = vld [vmem:[%s13] sm:$0x1]
    %v1605 = vlaneseq
    %v1606 = vshrl.u32 %v1605, 7
    %v1607 = vsub.s32 0, %v1606
    %v1608 = vrot.slane %v1603, %v1607
    %v1618 = vunpack.c.l.b16 %v1595
    %v1619 = vunpack.c.l.b16 %v1596
    %v1620 = vunpack.c.l.b16 %v1597
    %v1621 = vunpack.c.l.b16 %v1598
    %v1622 = vunpack.c.l.b16 %v1599
    %v1623 = vunpack.c.l.b16 %v1600
    %v1624 = vunpack.c.l.b16 %v1601
    %v1625 = vunpack.c.l.b16 %v1602
    %v1626 = vpack.c.b16 %v1619, %v1618
    %v1627 = vpack.c.b16 %v1621, %v1620
    %v1628 = vpack.c.b16 %v1623, %v1622
    %v1629 = vpack.c.b16 %v1625, %v1624
    %vm1634 = vcmask 523264
    %v1636 = vsel %vm1634, %v1594, 0
    %1638 = vmatprep.subr.bf16.mxu0 0
    %1639 = vmatpush1.bf16.msra.mxu0 0
    %1640 = vmatprep.subr.bf16.mxu0 0
    %1641 = vmatpush1.bf16.msra.mxu0 0
    %1642 = vmatprep.subr.bf16.mxu0 0
    %1643 = vmatpush1.bf16.msra.mxu0 0
    %1644 = vmatprep.subr.bf16.mxu0 0
    %1645 = vmatpush1.bf16.msra.mxu0 0
    %1646 = vmatprep.subr.bf16.mxu0 0
    %1647 = vmatpush1.bf16.msra.mxu0 %v1629
    %1648 = vmatprep.subr.bf16.mxu0 0
    %1649 = vmatpush1.bf16.msra.mxu0 %v1628
    %1650 = vmatprep.subr.bf16.mxu0 0
    %1651 = vmatpush1.bf16.msra.mxu0 %v1627
    %1652 = vmatprep.subr.bf16.mxu0 0
    %1653 = vmatpush1.bf16.msra.mxu0 %v1626
    %1654 = vmatprep.subr.bf16.mxu0 0
    %1655 = vmatpush2.bf16.msra.mxu0 0
    %1656 = vmatprep.subr.bf16.mxu0 0
    %1657 = vmatpush2.bf16.msra.mxu0 0
    %1658 = vmatprep.subr.bf16.mxu0 0
    %1659 = vmatpush2.bf16.msra.mxu0 0
    %1660 = vmatprep.subr.bf16.mxu0 0
    %1661 = vmatpush2.bf16.msra.mxu0 0
    %1662 = vmatprep.subr.bf16.mxu0 0
    %1663 = vmatpush2.bf16.msra.mxu0 0
    %1664 = vmatprep.subr.bf16.mxu0 0
    %1665 = vmatpush2.bf16.msra.mxu0 0
    %1666 = vmatprep.subr.bf16.mxu0 0
    %1667 = vmatpush2.bf16.msra.mxu0 0
    %1668 = vmatprep.subr.bf16.mxu0 0
    %1669 = vmatpush2.bf16.msra.mxu0 0
    %1670 = vmatprep.mubr.bf16.mxu0 0
    %1671 = vmatmul.mubr.bf16.gmra.mxu0 %v1636
    %v1672 = vpop.f32.mrf.mxu0
    %v1673 = vadd.f32 %v1608, %v1672
    %v1674 = vpop.f32.mrf.mxu0
    %v1675 = vpop.f32.mrf.mxu0
    %v1676 = vadd.f32 %v1608, %v1675
    %v1677 = vpop.f32.mrf.mxu0
    %1678 = vdwg.mxu0
    %v1679 = vadd.f32 %v1481, %v1673
    %v1680 = vadd.f32 %v1482, %v1676
    %1681 = vst.msk [vmem:[#allocation13] sm:$0xff] %vm1429, %v1679
    %1682 = vst.msk [vmem:[#allocation13 + $0x8] sm:$0xff] %vm1429, %v1680
    // Predicated region
    $region82: #{tpu_custom_call.1} parent=1 // pred_check
      _
    $region83: #{tpu_custom_call.1} parent=1 // pred_check_branch
      %1684 = sbr.rel (0) target = $region85
    $region84: #{tpu_custom_call.1} parent=1 // pred_region
      %s1686 = ssub.s32 256, 256
      %1687 = vsyncadd [#allocation4], %s1686
      %s1688 = sshll.u32 [#allocation13], 4
      %s1689 = int_to_ptr.vmem [resolvable:$true] %s1688
      %1694 = dma.vmem_to_hbm [thread:$0]  %s1689, 256, %s14, [#allocation4], 128, 128, 8
    $region85: #{tpu_custom_call.1} parent=1 // pred_fallthru
      _
    // Predicated region
    $region86: #{tpu_custom_call.1} parent=1 // pred_check
      _
    $region87: #{tpu_custom_call.1} parent=1 // pred_check_branch
      %1696 = sbr.rel (0) target = $region89
    $region88: #{tpu_custom_call.1} parent=1 // pred_region
      %1697 = dma.done [#allocation4], 256
    $region89: #{tpu_custom_call.1} parent=1 // pred_fallthru
      _
    %1698 = vsyncpa [#allocation3], 1
    %1699 = vsyncpa [#allocation6], 1
    %1700 = vsyncpa [#allocation9], 1
    %1701 = vsyncpa [#allocation12], 1
    %1702 = vsyncpa [#allocation4], 1

</llo_original>
